<compile_context>
chip_gen: v7x
topology: tpu7x:2x2x1
jax: 0.10.0
libtpu: 0.0.40
codegen_flags: <defaults>
</compile_context>

<pallas_src>
import functools
import math

import jax
import jax.numpy as jnp
from jax.experimental import pallas as pl
from jax.experimental.pallas import tpu as pltpu


def _double_critic_kernel(x_ref, w1_ref, b1_ref, w2_ref, b2_ref, w3_ref,
                          b3_ref, q_ref):
    """One grid step = one batch tile, BOTH critics.

    x_ref : [TB, d_in]      (obs || act, concatenated in the wrapper)
    w1_ref: [d_in, 2H]      b1_ref: [1, 2H]   (both critics fused on N)
    w2_ref: [2, H, H]       b2_ref: [2, 1, H]
    w3_ref: [2, 1, H]       b3_ref: [2, 1, 1]
    q_ref : [2, TB]         (batch on the lane axis)
    """
    H = w2_ref.shape[-1]

    # Layer 1: one K=d_in matmul covering both critics (N = 2H), f32 acc.
    # Cast the activation tile to the weights' dtype so bf16 params get a
    # native bf16 MXU matmul instead of a silent f32 promotion.
    x = x_ref[...].astype(w1_ref.dtype)
    h1 = jnp.dot(x, w1_ref[...], preferred_element_type=jnp.float32)
    h1 = jnp.maximum(h1 + b1_ref[...].astype(jnp.float32), 0.0)     # [TB, 2H]
    h1 = h1.astype(w2_ref.dtype)

    def one_critic(h1_c, c):
        # Layer 2: [TB, H] @ [H, H] on the MXU, f32 accumulation.
        h2 = jnp.dot(h1_c, w2_ref[c], preferred_element_type=jnp.float32)
        h2 = jnp.maximum(h2 + b2_ref[c].astype(jnp.float32), 0.0)   # [TB, H]
        # Layer 3 (out_features = 1): VPU multiply + lane reduction keeps the
        # degenerate N=1 matmul off the MXU.
        q = jnp.sum(h2 * w3_ref[c].astype(jnp.float32), axis=-1)    # [TB]
        return q[None, :] + b3_ref[c].astype(jnp.float32)           # [1, TB]

    # H is lane-aligned (asserted in the wrapper), so these slices are views.
    q_both = jnp.concatenate([one_critic(h1[:, :H], 0),
                              one_critic(h1[:, H:], 1)], axis=0)    # [2, TB]
    q_ref[...] = q_both.astype(q_ref.dtype)                         # one store


def double_critic_forward(obs, act, params, *, block_b=1024,
                          vmem_limit_bytes=48 * 1024 * 1024):
    """Pallas implementation of DoubleCritic.forward.

    obs: [B, obs_dim], act: [B, act_dim]
    params: dict in the kernel layout (see init_double_critic_params).
    Returns (q1, q2), each [B, 1] float32.
    """
    B = obs.shape[0]
    H = params["w2"].shape[-1]
    assert H % 128 == 0, "hidden_dim must be a multiple of 128 (lane-aligned)"

    # Concatenate once in the wrapper: B*d_in bytes of extra HBM traffic is
    # negligible vs. the weights, and it buys a single K=d_in layer-1 matmul.
    x = jnp.concatenate([obs, act], axis=-1)                 # [B, d_in]
    d_in = x.shape[1]

    # Batch tiling: a single full-extent tile whenever it fits (grid of 1 ->
    # no per-step overhead); otherwise lane-aligned tiles with an EVEN tile
    # count so v7x's two TensorCores split the parallel axis evenly.
    if B <= block_b:
        tb, nb = B, 1
    else:
        assert block_b % 128 == 0, "batch tile must be lane-aligned when tiling"
        tb = block_b
        nb = pl.cdiv(B, tb)
        nb += nb % 2
    b_pad = nb * tb
    if b_pad != B:
        x = jnp.pad(x, ((0, b_pad - B), (0, 0)))             # zero rows, row-indep.

    flops = 2 * b_pad * (d_in * 2 * H + 2 * H * H + 2 * H)
    bytes_accessed = int(x.size * x.dtype.itemsize
                         + sum(int(p.size) * p.dtype.itemsize
                               for p in params.values())
                         + 2 * b_pad * 4)

    grid_spec = pltpu.PrefetchScalarGridSpec(
        num_scalar_prefetch=0,
        grid=(nb,),
        in_specs=[
            pl.BlockSpec((tb, d_in), lambda i: (i, 0)),        # x tile
            # grid-invariant weights: fetched once, VMEM-resident across tiles
            pl.BlockSpec((d_in, 2 * H), lambda i: (0, 0)),     # w1 (fused)
            pl.BlockSpec((1, 2 * H), lambda i: (0, 0)),        # b1
            pl.BlockSpec((2, H, H), lambda i: (0, 0, 0)),      # w2 (both critics)
            pl.BlockSpec((2, 1, H), lambda i: (0, 0, 0)),      # b2
            pl.BlockSpec((2, 1, H), lambda i: (0, 0, 0)),      # w3 rows
            pl.BlockSpec((2, 1, 1), lambda i: (0, 0, 0)),      # b3
        ],
        out_specs=pl.BlockSpec((2, tb), lambda i: (0, i)),     # lane-dense q
    )

    q = pl.pallas_call(
        _double_critic_kernel,
        out_shape=jax.ShapeDtypeStruct((2, b_pad), jnp.float32),
        grid_spec=grid_spec,
        compiler_params=pltpu.CompilerParams(
            dimension_semantics=("parallel",),
            vmem_limit_bytes=vmem_limit_bytes),
        cost_estimate=pl.CostEstimate(flops=flops, transcendentals=0,
                                      bytes_accessed=bytes_accessed),
    )(x, params["w1"], params["b1"], params["w2"], params["b2"],
      params["w3"], params["b3"])

    return q[0, :B, None], q[1, :B, None]


def init_double_critic_params(key, obs_dim, act_dim, hidden_dim,
                              dtype=jnp.float32):
    """PyTorch-style U(-1/sqrt(fan_in), 1/sqrt(fan_in)) init in kernel layout:
    layer-1 weights of both critics fused along the output axis (cols
    [0:H]=critic1, [H:2H]=critic2) with input rows = obs||act; layers 2/3 are
    stacked on a leading critic axis and stored as [in, out] so the kernel
    computes y = x @ W + b (i.e. the transpose of nn.Linear.weight)."""
    H = hidden_dim
    d_in = obs_dim + act_dim
    k = jax.random.split(key, 6)

    def u(kk, shape, fan_in):
        b = 1.0 / math.sqrt(fan_in)
        return jax.random.uniform(kk, shape, dtype, -b, b)

    return dict(
        w1=u(k[0], (d_in, 2 * H), d_in),
        b1=u(k[1], (1, 2 * H), d_in),
        w2=u(k[2], (2, H, H), H),
        b2=u(k[3], (2, 1, H), H),
        w3=u(k[4], (2, 1, H), H),
        b3=u(k[5], (2, 1, 1), H),
    )


def double_critic_ref(obs, act, params):
    """Pure-JAX reference (same math as the PyTorch DoubleCritic forward)."""
    H = params["w2"].shape[-1]
    f32 = lambda a: a.astype(jnp.float32)
    x = jnp.concatenate([f32(obs), f32(act)], axis=-1)
    h1 = jnp.maximum(x @ f32(params["w1"]) + f32(params["b1"]), 0.0)
    outs = []
    for c in range(2):
        h = jnp.maximum(h1[:, c * H:(c + 1) * H] @ f32(params["w2"][c])
                        + f32(params["b2"][c]), 0.0)
        outs.append(jnp.sum(h * f32(params["w3"][c]), axis=-1, keepdims=True)
                    + f32(params["b3"][c]))
    return outs[0], outs[1]


if __name__ == "__main__":
    obs_dim, act_dim, hidden_dim = 24, 8, 256    # PyTorch default hidden_dim
    batch = 320

    key = jax.random.PRNGKey(0)
    k_obs, k_act, k_params = jax.random.split(key, 3)

    obs = jax.random.normal(k_obs, (batch, obs_dim), jnp.float32)
    act = jax.random.normal(k_act, (batch, act_dim), jnp.float32)
    params = init_double_critic_params(k_params, obs_dim, act_dim, hidden_dim)

    r1, r2 = double_critic_ref(obs, act, params)

    # Path 1: single batch tile (grid of 1 step) -- the preferred config.
    fwd_single = jax.jit(functools.partial(double_critic_forward, block_b=1024))
    q1, q2 = fwd_single(obs, act, params)
    jax.block_until_ready((q1, q2))
    assert q1.shape == (batch, 1) and q2.shape == (batch, 1)
    assert jnp.allclose(q1, r1, atol=1e-4, rtol=1e-4), \
        float(jnp.max(jnp.abs(q1 - r1)))
    assert jnp.allclose(q2, r2, atol=1e-4, rtol=1e-4), \
        float(jnp.max(jnp.abs(q2 - r2)))

    # Path 2: tiled batch (exercises padding + even tile count for v7x).
    fwd_tiled = jax.jit(functools.partial(double_critic_forward, block_b=128))
    t1, t2 = fwd_tiled(obs, act, params)
    jax.block_until_ready((t1, t2))
    assert jnp.allclose(t1, r1, atol=1e-4, rtol=1e-4), \
        float(jnp.max(jnp.abs(t1 - r1)))
    assert jnp.allclose(t2, r2, atol=1e-4, rtol=1e-4), \
        float(jnp.max(jnp.abs(t2 - r2)))

    print("KERNEL_OK")
</pallas_src>

<mosaic_0001>
module attributes {stable_mosaic.version = 11 : i64} {
  func.func @_double_critic_kernel(%arg0: i32, %arg1: memref<320x32xf32, #tpu.memory_space<vmem>>, %arg2: memref<32x512xf32, #tpu.memory_space<vmem>>, %arg3: memref<1x512xf32, #tpu.memory_space<vmem>>, %arg4: memref<2x256x256xf32, #tpu.memory_space<vmem>>, %arg5: memref<2x1x256xf32, #tpu.memory_space<vmem>>, %arg6: memref<2x1x256xf32, #tpu.memory_space<vmem>>, %arg7: memref<2x1x1xf32, #tpu.memory_space<vmem>>, %arg8: memref<2x320xf32, #tpu.memory_space<vmem>>) attributes {dimension_semantics = [#tpu.dimension_semantics<parallel>], iteration_bounds = array<i64: 1>, scalar_prefetch = 0 : i64, scratch_operands = 0 : i64, tpu.core_type = #tpu.core_type<tc>, window_params = [{transform_indices = @transform_0, window_bounds = array<i64: 320, 32>}, {pipeline_mode = #tpu.pipeline_mode<synchronous>, transform_indices = @transform_1, window_bounds = array<i64: 32, 512>}, {pipeline_mode = #tpu.pipeline_mode<synchronous>, transform_indices = @transform_2, window_bounds = array<i64: 1, 512>}, {pipeline_mode = #tpu.pipeline_mode<synchronous>, transform_indices = @transform_3, window_bounds = array<i64: 2, 256, 256>}, {pipeline_mode = #tpu.pipeline_mode<synchronous>, transform_indices = @transform_4, window_bounds = array<i64: 2, 1, 256>}, {pipeline_mode = #tpu.pipeline_mode<synchronous>, transform_indices = @transform_5, window_bounds = array<i64: 2, 1, 256>}, {pipeline_mode = #tpu.pipeline_mode<synchronous>, transform_indices = @transform_6, window_bounds = array<i64: 2, 1, 1>}, {transform_indices = @transform_7, window_bounds = array<i64: 2, 320>}]} {
    %c0 = arith.constant 0 : index
    %c0_0 = arith.constant 0 : index
    %0 = vector.load %arg1[%c0, %c0_0] : memref<320x32xf32, #tpu.memory_space<vmem>>, vector<320x32xf32>
    %c0_1 = arith.constant 0 : index
    %c0_2 = arith.constant 0 : index
    %1 = vector.load %arg2[%c0_1, %c0_2] : memref<32x512xf32, #tpu.memory_space<vmem>>, vector<32x512xf32>
    %cst = arith.constant dense<0.000000e+00> : vector<320x512xf32>
    %2 = tpu.matmul %0, %1, %cst {dimension_numbers = #tpu.dot_dimension_numbers<[1], [0], [0], [1], [0, 0, 1, 1], [], []>} : vector<320x32xf32>, vector<32x512xf32>, vector<320x512xf32> -> vector<320x512xf32>
    %c0_3 = arith.constant 0 : index
    %c0_4 = arith.constant 0 : index
    %3 = vector.load %arg3[%c0_3, %c0_4] : memref<1x512xf32, #tpu.memory_space<vmem>>, vector<1x512xf32>
    %4 = vector.broadcast %3 : vector<1x512xf32> to vector<320x512xf32>
    %5 = arith.addf %2, %4 : vector<320x512xf32>
    %cst_5 = arith.constant 0.000000e+00 : f32
    %6 = vector.broadcast %cst_5 : f32 to vector<320x512xf32>
    %7 = arith.maximumf %5, %6 : vector<320x512xf32>
    %8 = vector.extract_strided_slice %7 {offsets = [0, 0], sizes = [320, 256], strides = [1, 1]} : vector<320x512xf32> to vector<320x256xf32>
    %c0_6 = arith.constant 0 : index
    %c0_7 = arith.constant 0 : index
    %c0_8 = arith.constant 0 : index
    %9 = vector.load %arg4[%c0_6, %c0_7, %c0_8] : memref<2x256x256xf32, #tpu.memory_space<vmem>>, vector<1x256x256xf32>
    %10 = vector.shape_cast %9 : vector<1x256x256xf32> to vector<256x256xf32>
    %cst_9 = arith.constant dense<0.000000e+00> : vector<320x256xf32>
    %11 = tpu.matmul %8, %10, %cst_9 {dimension_numbers = #tpu.dot_dimension_numbers<[1], [0], [0], [1], [0, 0, 1, 1], [], []>} : vector<320x256xf32>, vector<256x256xf32>, vector<320x256xf32> -> vector<320x256xf32>
    %c0_10 = arith.constant 0 : index
    %c0_11 = arith.constant 0 : index
    %c0_12 = arith.constant 0 : index
    %12 = vector.load %arg5[%c0_10, %c0_11, %c0_12] : memref<2x1x256xf32, #tpu.memory_space<vmem>>, vector<1x1x256xf32>
    %13 = vector.shape_cast %12 : vector<1x1x256xf32> to vector<1x256xf32>
    %14 = vector.broadcast %13 : vector<1x256xf32> to vector<320x256xf32>
    %15 = arith.addf %11, %14 : vector<320x256xf32>
    %cst_13 = arith.constant 0.000000e+00 : f32
    %16 = vector.broadcast %cst_13 : f32 to vector<320x256xf32>
    %17 = arith.maximumf %15, %16 : vector<320x256xf32>
    %c0_14 = arith.constant 0 : index
    %c0_15 = arith.constant 0 : index
    %c0_16 = arith.constant 0 : index
    %18 = vector.load %arg6[%c0_14, %c0_15, %c0_16] : memref<2x1x256xf32, #tpu.memory_space<vmem>>, vector<1x1x256xf32>
    %19 = vector.shape_cast %18 : vector<1x1x256xf32> to vector<1x256xf32>
    %20 = vector.broadcast %19 : vector<1x256xf32> to vector<320x256xf32>
    %21 = arith.mulf %17, %20 : vector<320x256xf32>
    %cst_17 = arith.constant dense<0.000000e+00> : vector<320xf32>
    %22 = vector.multi_reduction <add>, %21, %cst_17 [1] : vector<320x256xf32> to vector<320xf32>
    %23 = vector.shape_cast %22 : vector<320xf32> to vector<1x320xf32>
    %c0_18 = arith.constant 0 : index
    %c0_19 = arith.constant 0 : index
    %c0_20 = arith.constant 0 : index
    %24 = vector.load %arg7[%c0_18, %c0_19, %c0_20] : memref<2x1x1xf32, #tpu.memory_space<vmem>>, vector<1x1x1xf32>
    %25 = vector.shape_cast %24 : vector<1x1x1xf32> to vector<1x1xf32>
    %26 = vector.broadcast %25 : vector<1x1xf32> to vector<1x320xf32>
    %27 = arith.addf %23, %26 : vector<1x320xf32>
    %28 = vector.extract_strided_slice %7 {offsets = [0, 256], sizes = [320, 256], strides = [1, 1]} : vector<320x512xf32> to vector<320x256xf32>
    %c1 = arith.constant 1 : index
    %c0_21 = arith.constant 0 : index
    %c0_22 = arith.constant 0 : index
    %29 = vector.load %arg4[%c1, %c0_21, %c0_22] : memref<2x256x256xf32, #tpu.memory_space<vmem>>, vector<1x256x256xf32>
    %30 = vector.shape_cast %29 : vector<1x256x256xf32> to vector<256x256xf32>
    %cst_23 = arith.constant dense<0.000000e+00> : vector<320x256xf32>
    %31 = tpu.matmul %28, %30, %cst_23 {dimension_numbers = #tpu.dot_dimension_numbers<[1], [0], [0], [1], [0, 0, 1, 1], [], []>} : vector<320x256xf32>, vector<256x256xf32>, vector<320x256xf32> -> vector<320x256xf32>
    %c1_24 = arith.constant 1 : index
    %c0_25 = arith.constant 0 : index
    %c0_26 = arith.constant 0 : index
    %32 = vector.load %arg5[%c1_24, %c0_25, %c0_26] : memref<2x1x256xf32, #tpu.memory_space<vmem>>, vector<1x1x256xf32>
    %33 = vector.shape_cast %32 : vector<1x1x256xf32> to vector<1x256xf32>
    %34 = vector.broadcast %33 : vector<1x256xf32> to vector<320x256xf32>
    %35 = arith.addf %31, %34 : vector<320x256xf32>
    %cst_27 = arith.constant 0.000000e+00 : f32
    %36 = vector.broadcast %cst_27 : f32 to vector<320x256xf32>
    %37 = arith.maximumf %35, %36 : vector<320x256xf32>
    %c1_28 = arith.constant 1 : index
    %c0_29 = arith.constant 0 : index
    %c0_30 = arith.constant 0 : index
    %38 = vector.load %arg6[%c1_28, %c0_29, %c0_30] : memref<2x1x256xf32, #tpu.memory_space<vmem>>, vector<1x1x256xf32>
    %39 = vector.shape_cast %38 : vector<1x1x256xf32> to vector<1x256xf32>
    %40 = vector.broadcast %39 : vector<1x256xf32> to vector<320x256xf32>
    %41 = arith.mulf %37, %40 : vector<320x256xf32>
    %cst_31 = arith.constant dense<0.000000e+00> : vector<320xf32>
    %42 = vector.multi_reduction <add>, %41, %cst_31 [1] : vector<320x256xf32> to vector<320xf32>
    %43 = vector.shape_cast %42 : vector<320xf32> to vector<1x320xf32>
    %c1_32 = arith.constant 1 : index
    %c0_33 = arith.constant 0 : index
    %c0_34 = arith.constant 0 : index
    %44 = vector.load %arg7[%c1_32, %c0_33, %c0_34] : memref<2x1x1xf32, #tpu.memory_space<vmem>>, vector<1x1x1xf32>
    %45 = vector.shape_cast %44 : vector<1x1x1xf32> to vector<1x1xf32>
    %46 = vector.broadcast %45 : vector<1x1xf32> to vector<1x320xf32>
    %47 = arith.addf %43, %46 : vector<1x320xf32>
    %48 = tpu.concatenate %27, %47 in 0 : vector<1x320xf32>, vector<1x320xf32> -> vector<2x320xf32>
    %c0_35 = arith.constant 0 : index
    %c0_36 = arith.constant 0 : index
    %49 = vector.load %arg8[%c0_35, %c0_36] : memref<2x320xf32, #tpu.memory_space<vmem>>, vector<2x320xf32>
    tpu.vector_store %arg8[%c0_35, %c0_36], %48 {strides = array<i32>} : memref<2x320xf32, #tpu.memory_space<vmem>>, vector<2x320xf32>,
    return
  }
  func.func @transform_0(%arg0: i32) -> (i32, i32) {
    %c0_i32 = arith.constant 0 : i32
    %c0_i32_0 = arith.constant 0 : i32
    return %arg0, %c0_i32 : i32, i32
  }
  func.func @transform_1(%arg0: i32) -> (i32, i32) {
    %c0_i32 = arith.constant 0 : i32
    %c0_i32_0 = arith.constant 0 : i32
    %c0_i32_1 = arith.constant 0 : i32
    return %c0_i32, %c0_i32_0 : i32, i32
  }
  func.func @transform_2(%arg0: i32) -> (i32, i32) {
    %c0_i32 = arith.constant 0 : i32
    %c0_i32_0 = arith.constant 0 : i32
    %c0_i32_1 = arith.constant 0 : i32
    return %c0_i32, %c0_i32_0 : i32, i32
  }
  func.func @transform_3(%arg0: i32) -> (i32, i32, i32) {
    %c0_i32 = arith.constant 0 : i32
    %c0_i32_0 = arith.constant 0 : i32
    %c0_i32_1 = arith.constant 0 : i32
    %c0_i32_2 = arith.constant 0 : i32
    return %c0_i32, %c0_i32_0, %c0_i32_1 : i32, i32, i32
  }
  func.func @transform_4(%arg0: i32) -> (i32, i32, i32) {
    %c0_i32 = arith.constant 0 : i32
    %c0_i32_0 = arith.constant 0 : i32
    %c0_i32_1 = arith.constant 0 : i32
    %c0_i32_2 = arith.constant 0 : i32
    return %c0_i32, %c0_i32_0, %c0_i32_1 : i32, i32, i32
  }
  func.func @transform_5(%arg0: i32) -> (i32, i32, i32) {
    %c0_i32 = arith.constant 0 : i32
    %c0_i32_0 = arith.constant 0 : i32
    %c0_i32_1 = arith.constant 0 : i32
    %c0_i32_2 = arith.constant 0 : i32
    return %c0_i32, %c0_i32_0, %c0_i32_1 : i32, i32, i32
  }
  func.func @transform_6(%arg0: i32) -> (i32, i32, i32) {
    %c0_i32 = arith.constant 0 : i32
    %c0_i32_0 = arith.constant 0 : i32
    %c0_i32_1 = arith.constant 0 : i32
    %c0_i32_2 = arith.constant 0 : i32
    return %c0_i32, %c0_i32_0, %c0_i32_1 : i32, i32, i32
  }
  func.func @transform_7(%arg0: i32) -> (i32, i32) {
    %c0_i32 = arith.constant 0 : i32
    %c0_i32_0 = arith.constant 0 : i32
    return %c0_i32, %arg0 : i32, i32
  }
}

</mosaic_0001>

<llo_original>
// kernel: double_critic_forward.1
$region0: #{double_critic_forward.1}
  #allocation0 [shape = 'u32[]', space=smem, size = 0x4, offset = 0x4, fixed_abs, tag = 'smem constant byte address 0x4 - core index']
  #allocation1 [shape = 'u32[144,128]{1,0:T(1,128)}', space=vmem, size = 0x12000, scoped, tag = 'internal scratch']
  %s0 = inlined_call_operand.vmem [shape: f32[320,32], index: 0, kind: input, shape index: {}]
  %s1 = inlined_call_operand.vmem [shape: f32[32,512], index: 1, kind: input, shape index: {}]
  %s2 = inlined_call_operand.vmem [shape: f32[1,512], index: 2, kind: input, shape index: {}]
  %s3 = inlined_call_operand.hbm [shape: f32[2,256,256], index: 3, kind: input, shape index: {}]
  %s4 = inlined_call_operand.vmem [shape: f32[2,1,256], index: 4, kind: input, shape index: {}]
  %s5 = inlined_call_operand.vmem [shape: f32[2,1,256], index: 5, kind: input, shape index: {}]
  %s6 = inlined_call_operand.vmem [shape: f32[2,1,1], index: 6, kind: input, shape index: {}]
  %s7 = inlined_call_operand.vmem [shape: f32[2,320], index: 7, kind: output, shape index: {}]
  %s8 = sld [smem:[#allocation0]]
  $region42: #{double_critic_forward.1} parent=0
    _
  %s10 = ssub.s32 1, %s8
  %s11 = scalar_select 0, %s10, %s8
  $region1: #{double_critic_forward.1} parent=0
    #allocation2 [shape = 'u8[524288]{0}', space=vmem, size = 0x80000, scoped, tag = 'input window, operand 3, single buffered']
    #allocation3 [shape = 's32[1]{0}', space=sflag, size = 0x4, scoped, tag = 'scoped memory for double_critic_forward.1']
    %12 = vsyncpa [#allocation3], 0
    // Predicated region
    $region2: #{double_critic_forward.1} parent=1 // pred_check
      _
    $region3: #{double_critic_forward.1} parent=1 // pred_check_branch
      %14 = sbr.rel (0) target = $region5
    $region4: #{double_critic_forward.1} parent=1 // pred_region
      _
    $region5: #{double_critic_forward.1} parent=1 // pred_fallthru
      _
    // Predicated region
    $region6: #{double_critic_forward.1} parent=1 // pred_check
      _
    $region7: #{double_critic_forward.1} parent=1 // pred_check_branch
      %16 = sbr.rel (0) target = $region9
    $region8: #{double_critic_forward.1} parent=1 // pred_region
      _
    $region9: #{double_critic_forward.1} parent=1 // pred_fallthru
      _
    // Predicated region
    $region10: #{double_critic_forward.1} parent=1 // pred_check
      _
    $region11: #{double_critic_forward.1} parent=1 // pred_check_branch
      %18 = sbr.rel (0) target = $region13
    $region12: #{double_critic_forward.1} parent=1 // pred_region
      _
    $region13: #{double_critic_forward.1} parent=1 // pred_fallthru
      _
    // Predicated region
    $region14: #{double_critic_forward.1} parent=1 // pred_check
      _
    $region15: #{double_critic_forward.1} parent=1 // pred_check_branch
      %20 = sbr.rel (0) target = $region17
    $region16: #{double_critic_forward.1} parent=1 // pred_region
      %s22 = ssub.s32 16384, 16384
      %23 = vsyncadd [#allocation3], %s22
      %s24 = sshll.u32 [#allocation2], 4
      %s25 = int_to_ptr.vmem [resolvable:$true] %s24
      %30 = dma.hbm_to_vmem [thread:$0]  %s3, 16384, %s25, [#allocation3], 256, 256, 16
    $region17: #{double_critic_forward.1} parent=1 // pred_fallthru
      _
    // Predicated region
    $region18: #{double_critic_forward.1} parent=1 // pred_check
      _
    $region19: #{double_critic_forward.1} parent=1 // pred_check_branch
      %32 = sbr.rel (0) target = $region21
    $region20: #{double_critic_forward.1} parent=1 // pred_region
      _
    $region21: #{double_critic_forward.1} parent=1 // pred_fallthru
      _
    // Predicated region
    $region22: #{double_critic_forward.1} parent=1 // pred_check
      _
    $region23: #{double_critic_forward.1} parent=1 // pred_check_branch
      %34 = sbr.rel (0) target = $region25
    $region24: #{double_critic_forward.1} parent=1 // pred_region
      _
    $region25: #{double_critic_forward.1} parent=1 // pred_fallthru
      _
    // Predicated region
    $region26: #{double_critic_forward.1} parent=1 // pred_check
      _
    $region27: #{double_critic_forward.1} parent=1 // pred_check_branch
      %36 = sbr.rel (0) target = $region29
    $region28: #{double_critic_forward.1} parent=1 // pred_region
      _
    $region29: #{double_critic_forward.1} parent=1 // pred_fallthru
      _
    // Predicated region
    $region30: #{double_critic_forward.1} parent=1 // pred_check
      _
    $region31: #{double_critic_forward.1} parent=1 // pred_check_branch
      %38 = sbr.rel (0) target = $region33
    $region32: #{double_critic_forward.1} parent=1 // pred_region
      %39 = dma.done [#allocation3], 16384
    $region33: #{double_critic_forward.1} parent=1 // pred_fallthru
      _
    %v40 = vld [vmem:[%s0] sm:$0xff]
    %v41 = vld [vmem:[%s0 + $0x8] sm:$0xff]
    %v42 = vld [vmem:[%s0 + $0x10] sm:$0xff]
    %v43 = vld [vmem:[%s0 + $0x18] sm:$0xff]
    %v44 = vld [vmem:[%s0 + $0x20] sm:$0xff]
    %v45 = vld [vmem:[%s0 + $0x28] sm:$0xff]
    %v46 = vld [vmem:[%s0 + $0x30] sm:$0xff]
    %v47 = vld [vmem:[%s0 + $0x38] sm:$0xff]
    %v48 = vld [vmem:[%s0 + $0x40] sm:$0xff]
    %v49 = vld [vmem:[%s0 + $0x48] sm:$0xff]
    %v50 = vld [vmem:[%s0 + $0x50] sm:$0xff]
    %v51 = vld [vmem:[%s0 + $0x58] sm:$0xff]
    %v52 = vld [vmem:[%s0 + $0x60] sm:$0xff]
    %v53 = vld [vmem:[%s0 + $0x68] sm:$0xff]
    %v54 = vld [vmem:[%s0 + $0x70] sm:$0xff]
    %v55 = vld [vmem:[%s0 + $0x78] sm:$0xff]
    %v56 = vld [vmem:[%s0 + $0x80] sm:$0xff]
    %v57 = vld [vmem:[%s0 + $0x88] sm:$0xff]
    %v58 = vld [vmem:[%s0 + $0x90] sm:$0xff]
    %v59 = vld [vmem:[%s0 + $0x98] sm:$0xff]
    %v60 = vld [vmem:[%s0 + $0xa0] sm:$0xff]
    %v61 = vld [vmem:[%s0 + $0xa8] sm:$0xff]
    %v62 = vld [vmem:[%s0 + $0xb0] sm:$0xff]
    %v63 = vld [vmem:[%s0 + $0xb8] sm:$0xff]
    %v64 = vld [vmem:[%s0 + $0xc0] sm:$0xff]
    %v65 = vld [vmem:[%s0 + $0xc8] sm:$0xff]
    %v66 = vld [vmem:[%s0 + $0xd0] sm:$0xff]
    %v67 = vld [vmem:[%s0 + $0xd8] sm:$0xff]
    %v68 = vld [vmem:[%s0 + $0xe0] sm:$0xff]
    %v69 = vld [vmem:[%s0 + $0xe8] sm:$0xff]
    %v70 = vld [vmem:[%s0 + $0xf0] sm:$0xff]
    %v71 = vld [vmem:[%s0 + $0xf8] sm:$0xff]
    %v72 = vld [vmem:[%s0 + $0x100] sm:$0xff]
    %v73 = vld [vmem:[%s0 + $0x108] sm:$0xff]
    %v74 = vld [vmem:[%s0 + $0x110] sm:$0xff]
    %v75 = vld [vmem:[%s0 + $0x118] sm:$0xff]
    %v76 = vld [vmem:[%s0 + $0x120] sm:$0xff]
    %v77 = vld [vmem:[%s0 + $0x128] sm:$0xff]
    %v78 = vld [vmem:[%s0 + $0x130] sm:$0xff]
    %v79 = vld [vmem:[%s0 + $0x138] sm:$0xff]
    %v80 = vld [vmem:[%s1] sm:$0xff]
    %v81 = vld [vmem:[%s1 + $0x8] sm:$0xff]
    %v82 = vld [vmem:[%s1 + $0x10] sm:$0xff]
    %v83 = vld [vmem:[%s1 + $0x18] sm:$0xff]
    %v84 = vld [vmem:[%s1 + $0x20] sm:$0xff]
    %v85 = vld [vmem:[%s1 + $0x28] sm:$0xff]
    %v86 = vld [vmem:[%s1 + $0x30] sm:$0xff]
    %v87 = vld [vmem:[%s1 + $0x38] sm:$0xff]
    %v88 = vld [vmem:[%s1 + $0x40] sm:$0xff]
    %v89 = vld [vmem:[%s1 + $0x48] sm:$0xff]
    %v90 = vld [vmem:[%s1 + $0x50] sm:$0xff]
    %v91 = vld [vmem:[%s1 + $0x58] sm:$0xff]
    %v92 = vld [vmem:[%s1 + $0x60] sm:$0xff]
    %v93 = vld [vmem:[%s1 + $0x68] sm:$0xff]
    %v94 = vld [vmem:[%s1 + $0x70] sm:$0xff]
    %v95 = vld [vmem:[%s1 + $0x78] sm:$0xff]
    %v96 = vld [vmem:[%s2] sm:$0xf]
    %v98 = vlaneseq
    %v99 = vshrl.u32 %v98, 7
    %v100 = vsub.s32 0, %v99
    %v101 = vrot.slane %v96, %v100
    %v102 = vlaneseq
    %v103 = vshrl.u32 %v102, 7
    %v104 = vsub.s32 1, %v103
    %v105 = vrot.slane %v96, %v104
    %v106 = vlaneseq
    %v107 = vshrl.u32 %v106, 7
    %v108 = vsub.s32 2, %v107
    %v109 = vrot.slane %v96, %v108
    %v110 = vlaneseq
    %v111 = vshrl.u32 %v110, 7
    %v112 = vsub.s32 3, %v111
    %v113 = vrot.slane %v96, %v112
    %vm118 = vcmask 261120
    %v120 = vsel %vm118, %v40, 0
    %v123 = vsel %vm118, %v41, 0
    %v126 = vsel %vm118, %v42, 0
    %v129 = vsel %vm118, %v43, 0
    %v132 = vsel %vm118, %v44, 0
    %v135 = vsel %vm118, %v45, 0
    %v138 = vsel %vm118, %v46, 0
    %v141 = vsel %vm118, %v47, 0
    %v144 = vsel %vm118, %v48, 0
    %v147 = vsel %vm118, %v49, 0
    %v150 = vsel %vm118, %v50, 0
    %v153 = vsel %vm118, %v51, 0
    %v156 = vsel %vm118, %v52, 0
    %v159 = vsel %vm118, %v53, 0
    %v162 = vsel %vm118, %v54, 0
    %v165 = vsel %vm118, %v55, 0
    %v168 = vsel %vm118, %v56, 0
    %v171 = vsel %vm118, %v57, 0
    %v174 = vsel %vm118, %v58, 0
    %v177 = vsel %vm118, %v59, 0
    %v180 = vsel %vm118, %v60, 0
    %v183 = vsel %vm118, %v61, 0
    %v186 = vsel %vm118, %v62, 0
    %v189 = vsel %vm118, %v63, 0
    %v192 = vsel %vm118, %v64, 0
    %v195 = vsel %vm118, %v65, 0
    %v198 = vsel %vm118, %v66, 0
    %v201 = vsel %vm118, %v67, 0
    %v204 = vsel %vm118, %v68, 0
    %v207 = vsel %vm118, %v69, 0
    %v210 = vsel %vm118, %v70, 0
    %v213 = vsel %vm118, %v71, 0
    %v216 = vsel %vm118, %v72, 0
    %v219 = vsel %vm118, %v73, 0
    %v222 = vsel %vm118, %v74, 0
    %v225 = vsel %vm118, %v75, 0
    %v228 = vsel %vm118, %v76, 0
    %v231 = vsel %vm118, %v77, 0
    %v234 = vsel %vm118, %v78, 0
    %v237 = vsel %vm118, %v79, 0
    %239 = vmatprep.subr.mxu0 %v81
    %240 = vmatpush1.msra.mxu0 %v80
    %241 = vmatprep.subr.mxu0 %v85
    %242 = vmatpush1.msra.mxu0 %v84
    %243 = vmatprep.subr.mxu0 %v89
    %244 = vmatpush1.msra.mxu0 %v88
    %245 = vmatprep.subr.mxu0 %v93
    %246 = vmatpush1.msra.mxu0 %v92
    %247 = vmatprep.subr.mxu0 0.0
    %248 = vmatpush1.msra.mxu0 0.0
    %249 = vmatprep.subr.mxu0 0.0
    %250 = vmatpush1.msra.mxu0 0.0
    %251 = vmatprep.subr.mxu0 0.0
    %252 = vmatpush1.msra.mxu0 0.0
    %253 = vmatprep.subr.mxu0 0.0
    %254 = vmatpush1.msra.mxu0 0.0
    %255 = vmatprep.subr.mxu0 0.0
    %256 = vmatpush1.msra.mxu0 0.0
    %257 = vmatprep.subr.mxu0 0.0
    %258 = vmatpush1.msra.mxu0 0.0
    %259 = vmatprep.subr.mxu0 0.0
    %260 = vmatpush1.msra.mxu0 0.0
    %261 = vmatprep.subr.mxu0 0.0
    %262 = vmatpush1.msra.mxu0 0.0
    %263 = vmatprep.subr.mxu0 0.0
    %264 = vmatpush1.msra.mxu0 0.0
    %265 = vmatprep.subr.mxu0 0.0
    %266 = vmatpush1.msra.mxu0 0.0
    %267 = vmatprep.subr.mxu0 0.0
    %268 = vmatpush1.msra.mxu0 0.0
    %269 = vmatprep.subr.mxu0 0.0
    %270 = vmatpush1.msra.mxu0 0.0
    %271 = vmatprep.subr.mxu0 0.0
    %272 = vmatpush1.msra.mxu0 0.0
    %273 = vmatprep.subr.mxu0 0.0
    %274 = vmatpush1.msra.mxu0 0.0
    %275 = vmatprep.subr.mxu0 0.0
    %276 = vmatpush1.msra.mxu0 0.0
    %277 = vmatprep.subr.mxu0 0.0
    %278 = vmatpush1.msra.mxu0 0.0
    %279 = vmatprep.subr.mxu0 0.0
    %280 = vmatpush1.msra.mxu0 0.0
    %281 = vmatprep.subr.mxu0 0.0
    %282 = vmatpush1.msra.mxu0 0.0
    %283 = vmatprep.subr.mxu0 0.0
    %284 = vmatpush1.msra.mxu0 0.0
    %285 = vmatprep.subr.mxu0 0.0
    %286 = vmatpush1.msra.mxu0 0.0
    %287 = vmatprep.subr.mxu0 0.0
    %288 = vmatpush1.msra.mxu0 0.0
    %289 = vmatprep.subr.mxu0 0.0
    %290 = vmatpush1.msra.mxu0 0.0
    %291 = vmatprep.subr.mxu0 0.0
    %292 = vmatpush1.msra.mxu0 0.0
    %293 = vmatprep.subr.mxu0 0.0
    %294 = vmatpush1.msra.mxu0 0.0
    %295 = vmatprep.subr.mxu0 0.0
    %296 = vmatpush1.msra.mxu0 0.0
    %297 = vmatprep.subr.mxu0 0.0
    %298 = vmatpush1.msra.mxu0 0.0
    %299 = vmatprep.subr.mxu0 0.0
    %300 = vmatpush1.msra.mxu0 0.0
    %301 = vmatprep.subr.mxu0 0.0
    %302 = vmatpush1.msra.mxu0 0.0
    %303 = vmatprep.mubr.f32.mxu0 0.0
    %304 = vmatmul.mubr.f32.gmra.mrb[0].mxu0 %v120
    %v305 = vpop.f32.mrb[0].mxu0
    %v306 = vadd.f32 %v101, %v305
    %v307 = vpop.f32.mrb[0].mxu0
    %v308 = vadd.f32 %v105, %v307
    %309 = vmatprep.mubr.f32.mxu0 0.0
    %310 = vmatmul.mubr.f32.gmra.mrb[0].mxu0 %v123
    %v311 = vpop.f32.mrb[0].mxu0
    %v312 = vadd.f32 %v101, %v311
    %v313 = vpop.f32.mrb[0].mxu0
    %v314 = vadd.f32 %v105, %v313
    %315 = vmatprep.mubr.f32.mxu0 0.0
    %316 = vmatmul.mubr.f32.gmra.mrb[0].mxu0 %v126
    %v317 = vpop.f32.mrb[0].mxu0
    %v318 = vadd.f32 %v101, %v317
    %v319 = vpop.f32.mrb[0].mxu0
    %v320 = vadd.f32 %v105, %v319
    %321 = vmatprep.mubr.f32.mxu0 0.0
    %322 = vmatmul.mubr.f32.gmra.mrb[0].mxu0 %v129
    %v323 = vpop.f32.mrb[0].mxu0
    %v324 = vadd.f32 %v101, %v323
    %v325 = vpop.f32.mrb[0].mxu0
    %v326 = vadd.f32 %v105, %v325
    %327 = vmatprep.mubr.f32.mxu0 0.0
    %328 = vmatmul.mubr.f32.gmra.mrb[0].mxu0 %v132
    %v329 = vpop.f32.mrb[0].mxu0
    %v330 = vadd.f32 %v101, %v329
    %v331 = vpop.f32.mrb[0].mxu0
    %v332 = vadd.f32 %v105, %v331
    %333 = vmatprep.mubr.f32.mxu0 0.0
    %334 = vmatmul.mubr.f32.gmra.mrb[0].mxu0 %v135
    %v335 = vpop.f32.mrb[0].mxu0
    %v336 = vadd.f32 %v101, %v335
    %v337 = vpop.f32.mrb[0].mxu0
    %v338 = vadd.f32 %v105, %v337
    %339 = vmatprep.mubr.f32.mxu0 0.0
    %340 = vmatmul.mubr.f32.gmra.mrb[0].mxu0 %v138
    %v341 = vpop.f32.mrb[0].mxu0
    %v342 = vadd.f32 %v101, %v341
    %v343 = vpop.f32.mrb[0].mxu0
    %v344 = vadd.f32 %v105, %v343
    %345 = vmatprep.mubr.f32.mxu0 0.0
    %346 = vmatmul.mubr.f32.gmra.mrb[0].mxu0 %v141
    %v347 = vpop.f32.mrb[0].mxu0
    %v348 = vadd.f32 %v101, %v347
    %v349 = vpop.f32.mrb[0].mxu0
    %v350 = vadd.f32 %v105, %v349
    %351 = vmatprep.mubr.f32.mxu0 0.0
    %352 = vmatmul.mubr.f32.gmra.mrb[0].mxu0 %v144
    %v353 = vpop.f32.mrb[0].mxu0
    %v354 = vadd.f32 %v101, %v353
    %v355 = vpop.f32.mrb[0].mxu0
    %v356 = vadd.f32 %v105, %v355
    %357 = vmatprep.mubr.f32.mxu0 0.0
    %358 = vmatmul.mubr.f32.gmra.mrb[0].mxu0 %v147
    %v359 = vpop.f32.mrb[0].mxu0
    %v360 = vadd.f32 %v101, %v359
    %v361 = vpop.f32.mrb[0].mxu0
    %v362 = vadd.f32 %v105, %v361
    %363 = vmatprep.mubr.f32.mxu0 0.0
    %364 = vmatmul.mubr.f32.gmra.mrb[0].mxu0 %v150
    %v365 = vpop.f32.mrb[0].mxu0
    %v366 = vadd.f32 %v101, %v365
    %v367 = vpop.f32.mrb[0].mxu0
    %v368 = vadd.f32 %v105, %v367
    %369 = vmatprep.mubr.f32.mxu0 0.0
    %370 = vmatmul.mubr.f32.gmra.mrb[0].mxu0 %v153
    %v371 = vpop.f32.mrb[0].mxu0
    %v372 = vadd.f32 %v101, %v371
    %v373 = vpop.f32.mrb[0].mxu0
    %v374 = vadd.f32 %v105, %v373
    %375 = vmatprep.mubr.f32.mxu0 0.0
    %376 = vmatmul.mubr.f32.gmra.mrb[0].mxu0 %v156
    %v377 = vpop.f32.mrb[0].mxu0
    %v378 = vadd.f32 %v101, %v377
    %v379 = vpop.f32.mrb[0].mxu0
    %v380 = vadd.f32 %v105, %v379
    %381 = vmatprep.mubr.f32.mxu0 0.0
    %382 = vmatmul.mubr.f32.gmra.mrb[0].mxu0 %v159
    %v383 = vpop.f32.mrb[0].mxu0
    %v384 = vadd.f32 %v101, %v383
    %v385 = vpop.f32.mrb[0].mxu0
    %v386 = vadd.f32 %v105, %v385
    %387 = vmatprep.mubr.f32.mxu0 0.0
    %388 = vmatmul.mubr.f32.gmra.mrb[0].mxu0 %v162
    %v389 = vpop.f32.mrb[0].mxu0
    %v390 = vadd.f32 %v101, %v389
    %v391 = vpop.f32.mrb[0].mxu0
    %v392 = vadd.f32 %v105, %v391
    %393 = vmatprep.mubr.f32.mxu0 0.0
    %394 = vmatmul.mubr.f32.gmra.mrb[0].mxu0 %v165
    %v395 = vpop.f32.mrb[0].mxu0
    %v396 = vadd.f32 %v101, %v395
    %v397 = vpop.f32.mrb[0].mxu0
    %v398 = vadd.f32 %v105, %v397
    %399 = vmatprep.mubr.f32.mxu0 0.0
    %400 = vmatmul.mubr.f32.gmra.mrb[0].mxu0 %v168
    %v401 = vpop.f32.mrb[0].mxu0
    %v402 = vadd.f32 %v101, %v401
    %v403 = vpop.f32.mrb[0].mxu0
    %v404 = vadd.f32 %v105, %v403
    %405 = vmatprep.mubr.f32.mxu0 0.0
    %406 = vmatmul.mubr.f32.gmra.mrb[0].mxu0 %v171
    %v407 = vpop.f32.mrb[0].mxu0
    %v408 = vadd.f32 %v101, %v407
    %v409 = vpop.f32.mrb[0].mxu0
    %v410 = vadd.f32 %v105, %v409
    %411 = vmatprep.mubr.f32.mxu0 0.0
    %412 = vmatmul.mubr.f32.gmra.mrb[0].mxu0 %v174
    %v413 = vpop.f32.mrb[0].mxu0
    %v414 = vadd.f32 %v101, %v413
    %v415 = vpop.f32.mrb[0].mxu0
    %v416 = vadd.f32 %v105, %v415
    %417 = vmatprep.mubr.f32.mxu0 0.0
    %418 = vmatmul.mubr.f32.gmra.mrb[0].mxu0 %v177
    %v419 = vpop.f32.mrb[0].mxu0
    %v420 = vadd.f32 %v101, %v419
    %v421 = vpop.f32.mrb[0].mxu0
    %v422 = vadd.f32 %v105, %v421
    %423 = vmatprep.mubr.f32.mxu0 0.0
    %424 = vmatmul.mubr.f32.gmra.mrb[0].mxu0 %v180
    %v425 = vpop.f32.mrb[0].mxu0
    %v426 = vadd.f32 %v101, %v425
    %v427 = vpop.f32.mrb[0].mxu0
    %v428 = vadd.f32 %v105, %v427
    %429 = vmatprep.mubr.f32.mxu0 0.0
    %430 = vmatmul.mubr.f32.gmra.mrb[0].mxu0 %v183
    %v431 = vpop.f32.mrb[0].mxu0
    %v432 = vadd.f32 %v101, %v431
    %v433 = vpop.f32.mrb[0].mxu0
    %v434 = vadd.f32 %v105, %v433
    %435 = vmatprep.mubr.f32.mxu0 0.0
    %436 = vmatmul.mubr.f32.gmra.mrb[0].mxu0 %v186
    %v437 = vpop.f32.mrb[0].mxu0
    %v438 = vadd.f32 %v101, %v437
    %v439 = vpop.f32.mrb[0].mxu0
    %v440 = vadd.f32 %v105, %v439
    %441 = vmatprep.mubr.f32.mxu0 0.0
    %442 = vmatmul.mubr.f32.gmra.mrb[0].mxu0 %v189
    %v443 = vpop.f32.mrb[0].mxu0
    %v444 = vadd.f32 %v101, %v443
    %v445 = vpop.f32.mrb[0].mxu0
    %v446 = vadd.f32 %v105, %v445
    %447 = vmatprep.mubr.f32.mxu0 0.0
    %448 = vmatmul.mubr.f32.gmra.mrb[0].mxu0 %v192
    %v449 = vpop.f32.mrb[0].mxu0
    %v450 = vadd.f32 %v101, %v449
    %v451 = vpop.f32.mrb[0].mxu0
    %v452 = vadd.f32 %v105, %v451
    %453 = vmatprep.mubr.f32.mxu0 0.0
    %454 = vmatmul.mubr.f32.gmra.mrb[0].mxu0 %v195
    %v455 = vpop.f32.mrb[0].mxu0
    %v456 = vadd.f32 %v101, %v455
    %v457 = vpop.f32.mrb[0].mxu0
    %v458 = vadd.f32 %v105, %v457
    %459 = vmatprep.mubr.f32.mxu0 0.0
    %460 = vmatmul.mubr.f32.gmra.mrb[0].mxu0 %v198
    %v461 = vpop.f32.mrb[0].mxu0
    %v462 = vadd.f32 %v101, %v461
    %v463 = vpop.f32.mrb[0].mxu0
    %v464 = vadd.f32 %v105, %v463
    %465 = vmatprep.mubr.f32.mxu0 0.0
    %466 = vmatmul.mubr.f32.gmra.mrb[0].mxu0 %v201
    %v467 = vpop.f32.mrb[0].mxu0
    %v468 = vadd.f32 %v101, %v467
    %v469 = vpop.f32.mrb[0].mxu0
    %v470 = vadd.f32 %v105, %v469
    %471 = vmatprep.mubr.f32.mxu0 0.0
    %472 = vmatmul.mubr.f32.gmra.mrb[0].mxu0 %v204
    %v473 = vpop.f32.mrb[0].mxu0
    %v474 = vadd.f32 %v101, %v473
    %v475 = vpop.f32.mrb[0].mxu0
    %v476 = vadd.f32 %v105, %v475
    %477 = vmatprep.mubr.f32.mxu0 0.0
    %478 = vmatmul.mubr.f32.gmra.mrb[0].mxu0 %v207
    %v479 = vpop.f32.mrb[0].mxu0
    %v480 = vadd.f32 %v101, %v479
    %v481 = vpop.f32.mrb[0].mxu0
    %v482 = vadd.f32 %v105, %v481
    %483 = vmatprep.mubr.f32.mxu0 0.0
    %484 = vmatmul.mubr.f32.gmra.mrb[0].mxu0 %v210
    %v485 = vpop.f32.mrb[0].mxu0
    %v486 = vadd.f32 %v101, %v485
    %v487 = vpop.f32.mrb[0].mxu0
    %v488 = vadd.f32 %v105, %v487
    %489 = vmatprep.mubr.f32.mxu0 0.0
    %490 = vmatmul.mubr.f32.gmra.mrb[0].mxu0 %v213
    %v491 = vpop.f32.mrb[0].mxu0
    %v492 = vadd.f32 %v101, %v491
    %v493 = vpop.f32.mrb[0].mxu0
    %v494 = vadd.f32 %v105, %v493
    %495 = vmatprep.mubr.f32.mxu0 0.0
    %496 = vmatmul.mubr.f32.gmra.mrb[0].mxu0 %v216
    %v497 = vpop.f32.mrb[0].mxu0
    %v498 = vadd.f32 %v101, %v497
    %v499 = vpop.f32.mrb[0].mxu0
    %v500 = vadd.f32 %v105, %v499
    %501 = vmatprep.mubr.f32.mxu0 0.0
    %502 = vmatmul.mubr.f32.gmra.mrb[0].mxu0 %v219
    %v503 = vpop.f32.mrb[0].mxu0
    %v504 = vadd.f32 %v101, %v503
    %v505 = vpop.f32.mrb[0].mxu0
    %v506 = vadd.f32 %v105, %v505
    %507 = vmatprep.mubr.f32.mxu0 0.0
    %508 = vmatmul.mubr.f32.gmra.mrb[0].mxu0 %v222
    %v509 = vpop.f32.mrb[0].mxu0
    %v510 = vadd.f32 %v101, %v509
    %v511 = vpop.f32.mrb[0].mxu0
    %v512 = vadd.f32 %v105, %v511
    %513 = vmatprep.mubr.f32.mxu0 0.0
    %514 = vmatmul.mubr.f32.gmra.mrb[0].mxu0 %v225
    %v515 = vpop.f32.mrb[0].mxu0
    %v516 = vadd.f32 %v101, %v515
    %v517 = vpop.f32.mrb[0].mxu0
    %v518 = vadd.f32 %v105, %v517
    %519 = vmatprep.mubr.f32.mxu0 0.0
    %520 = vmatmul.mubr.f32.gmra.mrb[0].mxu0 %v228
    %v521 = vpop.f32.mrb[0].mxu0
    %v522 = vadd.f32 %v101, %v521
    %v523 = vpop.f32.mrb[0].mxu0
    %v524 = vadd.f32 %v105, %v523
    %525 = vmatprep.mubr.f32.mxu0 0.0
    %526 = vmatmul.mubr.f32.gmra.mrb[0].mxu0 %v231
    %v527 = vpop.f32.mrb[0].mxu0
    %v528 = vadd.f32 %v101, %v527
    %v529 = vpop.f32.mrb[0].mxu0
    %v530 = vadd.f32 %v105, %v529
    %531 = vmatprep.mubr.f32.mxu0 0.0
    %532 = vmatmul.mubr.f32.gmra.mrb[0].mxu0 %v234
    %v533 = vpop.f32.mrb[0].mxu0
    %v534 = vadd.f32 %v101, %v533
    %v535 = vpop.f32.mrb[0].mxu0
    %v536 = vadd.f32 %v105, %v535
    %537 = vmatprep.mubr.f32.mxu0 0.0
    %538 = vmatmul.mubr.f32.gmra.mrb[0].mxu0 %v237
    %v539 = vpop.f32.mrb[0].mxu0
    %v540 = vadd.f32 %v101, %v539
    %v541 = vpop.f32.mrb[0].mxu0
    %v542 = vadd.f32 %v105, %v541
    %543 = vdwg.mxu0
    %544 = vmatprep.subr.mxu0 %v83
    %545 = vmatpush1.msra.mxu0 %v82
    %546 = vmatprep.subr.mxu0 %v87
    %547 = vmatpush1.msra.mxu0 %v86
    %548 = vmatprep.subr.mxu0 %v91
    %549 = vmatpush1.msra.mxu0 %v90
    %550 = vmatprep.subr.mxu0 %v95
    %551 = vmatpush1.msra.mxu0 %v94
    %552 = vmatprep.subr.mxu0 0.0
    %553 = vmatpush1.msra.mxu0 0.0
    %554 = vmatprep.subr.mxu0 0.0
    %555 = vmatpush1.msra.mxu0 0.0
    %556 = vmatprep.subr.mxu0 0.0
    %557 = vmatpush1.msra.mxu0 0.0
    %558 = vmatprep.subr.mxu0 0.0
    %559 = vmatpush1.msra.mxu0 0.0
    %560 = vmatprep.subr.mxu0 0.0
    %561 = vmatpush1.msra.mxu0 0.0
    %562 = vmatprep.subr.mxu0 0.0
    %563 = vmatpush1.msra.mxu0 0.0
    %564 = vmatprep.subr.mxu0 0.0
    %565 = vmatpush1.msra.mxu0 0.0
    %566 = vmatprep.subr.mxu0 0.0
    %567 = vmatpush1.msra.mxu0 0.0
    %568 = vmatprep.subr.mxu0 0.0
    %569 = vmatpush1.msra.mxu0 0.0
    %570 = vmatprep.subr.mxu0 0.0
    %571 = vmatpush1.msra.mxu0 0.0
    %572 = vmatprep.subr.mxu0 0.0
    %573 = vmatpush1.msra.mxu0 0.0
    %574 = vmatprep.subr.mxu0 0.0
    %575 = vmatpush1.msra.mxu0 0.0
    %576 = vmatprep.subr.mxu0 0.0
    %577 = vmatpush1.msra.mxu0 0.0
    %578 = vmatprep.subr.mxu0 0.0
    %579 = vmatpush1.msra.mxu0 0.0
    %580 = vmatprep.subr.mxu0 0.0
    %581 = vmatpush1.msra.mxu0 0.0
    %582 = vmatprep.subr.mxu0 0.0
    %583 = vmatpush1.msra.mxu0 0.0
    %584 = vmatprep.subr.mxu0 0.0
    %585 = vmatpush1.msra.mxu0 0.0
    %586 = vmatprep.subr.mxu0 0.0
    %587 = vmatpush1.msra.mxu0 0.0
    %588 = vmatprep.subr.mxu0 0.0
    %589 = vmatpush1.msra.mxu0 0.0
    %590 = vmatprep.subr.mxu0 0.0
    %591 = vmatpush1.msra.mxu0 0.0
    %592 = vmatprep.subr.mxu0 0.0
    %593 = vmatpush1.msra.mxu0 0.0
    %594 = vmatprep.subr.mxu0 0.0
    %595 = vmatpush1.msra.mxu0 0.0
    %596 = vmatprep.subr.mxu0 0.0
    %597 = vmatpush1.msra.mxu0 0.0
    %598 = vmatprep.subr.mxu0 0.0
    %599 = vmatpush1.msra.mxu0 0.0
    %600 = vmatprep.subr.mxu0 0.0
    %601 = vmatpush1.msra.mxu0 0.0
    %602 = vmatprep.subr.mxu0 0.0
    %603 = vmatpush1.msra.mxu0 0.0
    %604 = vmatprep.subr.mxu0 0.0
    %605 = vmatpush1.msra.mxu0 0.0
    %606 = vmatprep.subr.mxu0 0.0
    %607 = vmatpush1.msra.mxu0 0.0
    %608 = vmatprep.mubr.f32.mxu0 0.0
    %609 = vmatmul.mubr.f32.gmra.mrb[0].mxu0 %v120
    %v610 = vpop.f32.mrb[0].mxu0
    %v611 = vadd.f32 %v109, %v610
    %v612 = vpop.f32.mrb[0].mxu0
    %v613 = vadd.f32 %v113, %v612
    %614 = vmatprep.mubr.f32.mxu0 0.0
    %615 = vmatmul.mubr.f32.gmra.mrb[0].mxu0 %v123
    %v616 = vpop.f32.mrb[0].mxu0
    %v617 = vadd.f32 %v109, %v616
    %v618 = vpop.f32.mrb[0].mxu0
    %v619 = vadd.f32 %v113, %v618
    %620 = vmatprep.mubr.f32.mxu0 0.0
    %621 = vmatmul.mubr.f32.gmra.mrb[0].mxu0 %v126
    %v622 = vpop.f32.mrb[0].mxu0
    %v623 = vadd.f32 %v109, %v622
    %v624 = vpop.f32.mrb[0].mxu0
    %v625 = vadd.f32 %v113, %v624
    %626 = vmatprep.mubr.f32.mxu0 0.0
    %627 = vmatmul.mubr.f32.gmra.mrb[0].mxu0 %v129
    %v628 = vpop.f32.mrb[0].mxu0
    %v629 = vadd.f32 %v109, %v628
    %v630 = vpop.f32.mrb[0].mxu0
    %v631 = vadd.f32 %v113, %v630
    %632 = vmatprep.mubr.f32.mxu0 0.0
    %633 = vmatmul.mubr.f32.gmra.mrb[0].mxu0 %v132
    %v634 = vpop.f32.mrb[0].mxu0
    %v635 = vadd.f32 %v109, %v634
    %v636 = vpop.f32.mrb[0].mxu0
    %v637 = vadd.f32 %v113, %v636
    %638 = vmatprep.mubr.f32.mxu0 0.0
    %639 = vmatmul.mubr.f32.gmra.mrb[0].mxu0 %v135
    %v640 = vpop.f32.mrb[0].mxu0
    %v641 = vadd.f32 %v109, %v640
    %v642 = vpop.f32.mrb[0].mxu0
    %v643 = vadd.f32 %v113, %v642
    %644 = vmatprep.mubr.f32.mxu0 0.0
    %645 = vmatmul.mubr.f32.gmra.mrb[0].mxu0 %v138
    %v646 = vpop.f32.mrb[0].mxu0
    %v647 = vadd.f32 %v109, %v646
    %v648 = vpop.f32.mrb[0].mxu0
    %v649 = vadd.f32 %v113, %v648
    %650 = vmatprep.mubr.f32.mxu0 0.0
    %651 = vmatmul.mubr.f32.gmra.mrb[0].mxu0 %v141
    %v652 = vpop.f32.mrb[0].mxu0
    %v653 = vadd.f32 %v109, %v652
    %v654 = vpop.f32.mrb[0].mxu0
    %v655 = vadd.f32 %v113, %v654
    %656 = vmatprep.mubr.f32.mxu0 0.0
    %657 = vmatmul.mubr.f32.gmra.mrb[0].mxu0 %v144
    %v658 = vpop.f32.mrb[0].mxu0
    %v659 = vadd.f32 %v109, %v658
    %v660 = vpop.f32.mrb[0].mxu0
    %v661 = vadd.f32 %v113, %v660
    %662 = vmatprep.mubr.f32.mxu0 0.0
    %663 = vmatmul.mubr.f32.gmra.mrb[0].mxu0 %v147
    %v664 = vpop.f32.mrb[0].mxu0
    %v665 = vadd.f32 %v109, %v664
    %v666 = vpop.f32.mrb[0].mxu0
    %v667 = vadd.f32 %v113, %v666
    %668 = vmatprep.mubr.f32.mxu0 0.0
    %669 = vmatmul.mubr.f32.gmra.mrb[0].mxu0 %v150
    %v670 = vpop.f32.mrb[0].mxu0
    %v671 = vadd.f32 %v109, %v670
    %v672 = vpop.f32.mrb[0].mxu0
    %v673 = vadd.f32 %v113, %v672
    %674 = vmatprep.mubr.f32.mxu0 0.0
    %675 = vmatmul.mubr.f32.gmra.mrb[0].mxu0 %v153
    %v676 = vpop.f32.mrb[0].mxu0
    %v677 = vadd.f32 %v109, %v676
    %v678 = vpop.f32.mrb[0].mxu0
    %v679 = vadd.f32 %v113, %v678
    %680 = vmatprep.mubr.f32.mxu0 0.0
    %681 = vmatmul.mubr.f32.gmra.mrb[0].mxu0 %v156
    %v682 = vpop.f32.mrb[0].mxu0
    %v683 = vadd.f32 %v109, %v682
    %v684 = vpop.f32.mrb[0].mxu0
    %v685 = vadd.f32 %v113, %v684
    %686 = vmatprep.mubr.f32.mxu0 0.0
    %687 = vmatmul.mubr.f32.gmra.mrb[0].mxu0 %v159
    %v688 = vpop.f32.mrb[0].mxu0
    %v689 = vadd.f32 %v109, %v688
    %v690 = vpop.f32.mrb[0].mxu0
    %v691 = vadd.f32 %v113, %v690
    %692 = vmatprep.mubr.f32.mxu0 0.0
    %693 = vmatmul.mubr.f32.gmra.mrb[0].mxu0 %v162
    %v694 = vpop.f32.mrb[0].mxu0
    %v695 = vadd.f32 %v109, %v694
    %v696 = vpop.f32.mrb[0].mxu0
    %v697 = vadd.f32 %v113, %v696
    %698 = vmatprep.mubr.f32.mxu0 0.0
    %699 = vmatmul.mubr.f32.gmra.mrb[0].mxu0 %v165
    %v700 = vpop.f32.mrb[0].mxu0
    %v701 = vadd.f32 %v109, %v700
    %v702 = vpop.f32.mrb[0].mxu0
    %v703 = vadd.f32 %v113, %v702
    %704 = vmatprep.mubr.f32.mxu0 0.0
    %705 = vmatmul.mubr.f32.gmra.mrb[0].mxu0 %v168
    %v706 = vpop.f32.mrb[0].mxu0
    %v707 = vadd.f32 %v109, %v706
    %v708 = vpop.f32.mrb[0].mxu0
    %v709 = vadd.f32 %v113, %v708
    %710 = vmatprep.mubr.f32.mxu0 0.0
    %711 = vmatmul.mubr.f32.gmra.mrb[0].mxu0 %v171
    %v712 = vpop.f32.mrb[0].mxu0
    %v713 = vadd.f32 %v109, %v712
    %v714 = vpop.f32.mrb[0].mxu0
    %v715 = vadd.f32 %v113, %v714
    %716 = vmatprep.mubr.f32.mxu0 0.0
    %717 = vmatmul.mubr.f32.gmra.mrb[0].mxu0 %v174
    %v718 = vpop.f32.mrb[0].mxu0
    %v719 = vadd.f32 %v109, %v718
    %v720 = vpop.f32.mrb[0].mxu0
    %v721 = vadd.f32 %v113, %v720
    %722 = vmatprep.mubr.f32.mxu0 0.0
    %723 = vmatmul.mubr.f32.gmra.mrb[0].mxu0 %v177
    %v724 = vpop.f32.mrb[0].mxu0
    %v725 = vadd.f32 %v109, %v724
    %v726 = vpop.f32.mrb[0].mxu0
    %v727 = vadd.f32 %v113, %v726
    %728 = vmatprep.mubr.f32.mxu0 0.0
    %729 = vmatmul.mubr.f32.gmra.mrb[0].mxu0 %v180
    %v730 = vpop.f32.mrb[0].mxu0
    %v731 = vadd.f32 %v109, %v730
    %v732 = vpop.f32.mrb[0].mxu0
    %v733 = vadd.f32 %v113, %v732
    %734 = vmatprep.mubr.f32.mxu0 0.0
    %735 = vmatmul.mubr.f32.gmra.mrb[0].mxu0 %v183
    %v736 = vpop.f32.mrb[0].mxu0
    %v737 = vadd.f32 %v109, %v736
    %v738 = vpop.f32.mrb[0].mxu0
    %v739 = vadd.f32 %v113, %v738
    %740 = vmatprep.mubr.f32.mxu0 0.0
    %741 = vmatmul.mubr.f32.gmra.mrb[0].mxu0 %v186
    %v742 = vpop.f32.mrb[0].mxu0
    %v743 = vadd.f32 %v109, %v742
    %v744 = vpop.f32.mrb[0].mxu0
    %v745 = vadd.f32 %v113, %v744
    %746 = vmatprep.mubr.f32.mxu0 0.0
    %747 = vmatmul.mubr.f32.gmra.mrb[0].mxu0 %v189
    %v748 = vpop.f32.mrb[0].mxu0
    %v749 = vadd.f32 %v109, %v748
    %v750 = vpop.f32.mrb[0].mxu0
    %v751 = vadd.f32 %v113, %v750
    %752 = vmatprep.mubr.f32.mxu0 0.0
    %753 = vmatmul.mubr.f32.gmra.mrb[0].mxu0 %v192
    %v754 = vpop.f32.mrb[0].mxu0
    %v755 = vadd.f32 %v109, %v754
    %v756 = vpop.f32.mrb[0].mxu0
    %v757 = vadd.f32 %v113, %v756
    %758 = vmatprep.mubr.f32.mxu0 0.0
    %759 = vmatmul.mubr.f32.gmra.mrb[0].mxu0 %v195
    %v760 = vpop.f32.mrb[0].mxu0
    %v761 = vadd.f32 %v109, %v760
    %v762 = vpop.f32.mrb[0].mxu0
    %v763 = vadd.f32 %v113, %v762
    %764 = vmatprep.mubr.f32.mxu0 0.0
    %765 = vmatmul.mubr.f32.gmra.mrb[0].mxu0 %v198
    %v766 = vpop.f32.mrb[0].mxu0
    %v767 = vadd.f32 %v109, %v766
    %v768 = vpop.f32.mrb[0].mxu0
    %v769 = vadd.f32 %v113, %v768
    %770 = vmatprep.mubr.f32.mxu0 0.0
    %771 = vmatmul.mubr.f32.gmra.mrb[0].mxu0 %v201
    %v772 = vpop.f32.mrb[0].mxu0
    %v773 = vadd.f32 %v109, %v772
    %v774 = vpop.f32.mrb[0].mxu0
    %v775 = vadd.f32 %v113, %v774
    %776 = vmatprep.mubr.f32.mxu0 0.0
    %777 = vmatmul.mubr.f32.gmra.mrb[0].mxu0 %v204
    %v778 = vpop.f32.mrb[0].mxu0
    %v779 = vadd.f32 %v109, %v778
    %v780 = vpop.f32.mrb[0].mxu0
    %v781 = vadd.f32 %v113, %v780
    %782 = vmatprep.mubr.f32.mxu0 0.0
    %783 = vmatmul.mubr.f32.gmra.mrb[0].mxu0 %v207
    %v784 = vpop.f32.mrb[0].mxu0
    %v785 = vadd.f32 %v109, %v784
    %v786 = vpop.f32.mrb[0].mxu0
    %v787 = vadd.f32 %v113, %v786
    %788 = vmatprep.mubr.f32.mxu0 0.0
    %789 = vmatmul.mubr.f32.gmra.mrb[0].mxu0 %v210
    %v790 = vpop.f32.mrb[0].mxu0
    %v791 = vadd.f32 %v109, %v790
    %v792 = vpop.f32.mrb[0].mxu0
    %v793 = vadd.f32 %v113, %v792
    %794 = vmatprep.mubr.f32.mxu0 0.0
    %795 = vmatmul.mubr.f32.gmra.mrb[0].mxu0 %v213
    %v796 = vpop.f32.mrb[0].mxu0
    %v797 = vadd.f32 %v109, %v796
    %v798 = vpop.f32.mrb[0].mxu0
    %v799 = vadd.f32 %v113, %v798
    %800 = vmatprep.mubr.f32.mxu0 0.0
    %801 = vmatmul.mubr.f32.gmra.mrb[0].mxu0 %v216
    %v802 = vpop.f32.mrb[0].mxu0
    %v803 = vadd.f32 %v109, %v802
    %v804 = vpop.f32.mrb[0].mxu0
    %v805 = vadd.f32 %v113, %v804
    %806 = vmatprep.mubr.f32.mxu0 0.0
    %807 = vmatmul.mubr.f32.gmra.mrb[0].mxu0 %v219
    %v808 = vpop.f32.mrb[0].mxu0
    %v809 = vadd.f32 %v109, %v808
    %v810 = vpop.f32.mrb[0].mxu0
    %v811 = vadd.f32 %v113, %v810
    %812 = vmatprep.mubr.f32.mxu0 0.0
    %813 = vmatmul.mubr.f32.gmra.mrb[0].mxu0 %v222
    %v814 = vpop.f32.mrb[0].mxu0
    %v815 = vadd.f32 %v109, %v814
    %v816 = vpop.f32.mrb[0].mxu0
    %v817 = vadd.f32 %v113, %v816
    %818 = vmatprep.mubr.f32.mxu0 0.0
    %819 = vmatmul.mubr.f32.gmra.mrb[0].mxu0 %v225
    %v820 = vpop.f32.mrb[0].mxu0
    %v821 = vadd.f32 %v109, %v820
    %v822 = vpop.f32.mrb[0].mxu0
    %v823 = vadd.f32 %v113, %v822
    %824 = vmatprep.mubr.f32.mxu0 0.0
    %825 = vmatmul.mubr.f32.gmra.mrb[0].mxu0 %v228
    %v826 = vpop.f32.mrb[0].mxu0
    %v827 = vadd.f32 %v109, %v826
    %v828 = vpop.f32.mrb[0].mxu0
    %v829 = vadd.f32 %v113, %v828
    %830 = vmatprep.mubr.f32.mxu0 0.0
    %831 = vmatmul.mubr.f32.gmra.mrb[0].mxu0 %v231
    %v832 = vpop.f32.mrb[0].mxu0
    %v833 = vadd.f32 %v109, %v832
    %v834 = vpop.f32.mrb[0].mxu0
    %v835 = vadd.f32 %v113, %v834
    %836 = vmatprep.mubr.f32.mxu0 0.0
    %837 = vmatmul.mubr.f32.gmra.mrb[0].mxu0 %v234
    %v838 = vpop.f32.mrb[0].mxu0
    %v839 = vadd.f32 %v109, %v838
    %v840 = vpop.f32.mrb[0].mxu0
    %v841 = vadd.f32 %v113, %v840
    %842 = vmatprep.mubr.f32.mxu0 0.0
    %843 = vmatmul.mubr.f32.gmra.mrb[0].mxu0 %v237
    %v844 = vpop.f32.mrb[0].mxu0
    %v845 = vadd.f32 %v109, %v844
    %v846 = vpop.f32.mrb[0].mxu0
    %v847 = vadd.f32 %v113, %v846
    %848 = vdwg.mxu0
    %v849 = vmax.f32 %v306, 0.0
    %v850 = vmax.f32 %v308, 0.0
    %v851 = vmax.f32 %v611, 0.0
    %v852 = vmax.f32 %v613, 0.0
    %v853 = vmax.f32 %v312, 0.0
    %v854 = vmax.f32 %v314, 0.0
    %v855 = vmax.f32 %v617, 0.0
    %v856 = vmax.f32 %v619, 0.0
    %v857 = vmax.f32 %v318, 0.0
    %v858 = vmax.f32 %v320, 0.0
    %v859 = vmax.f32 %v623, 0.0
    %v860 = vmax.f32 %v625, 0.0
    %v861 = vmax.f32 %v324, 0.0
    %v862 = vmax.f32 %v326, 0.0
    %v863 = vmax.f32 %v629, 0.0
    %v864 = vmax.f32 %v631, 0.0
    %v865 = vmax.f32 %v330, 0.0
    %v866 = vmax.f32 %v332, 0.0
    %v867 = vmax.f32 %v635, 0.0
    %v868 = vmax.f32 %v637, 0.0
    %v869 = vmax.f32 %v336, 0.0
    %v870 = vmax.f32 %v338, 0.0
    %v871 = vmax.f32 %v641, 0.0
    %v872 = vmax.f32 %v643, 0.0
    %v873 = vmax.f32 %v342, 0.0
    %v874 = vmax.f32 %v344, 0.0
    %v875 = vmax.f32 %v647, 0.0
    %v876 = vmax.f32 %v649, 0.0
    %v877 = vmax.f32 %v348, 0.0
    %v878 = vmax.f32 %v350, 0.0
    %v879 = vmax.f32 %v653, 0.0
    %v880 = vmax.f32 %v655, 0.0
    %v881 = vmax.f32 %v354, 0.0
    %v882 = vmax.f32 %v356, 0.0
    %v883 = vmax.f32 %v659, 0.0
    %v884 = vmax.f32 %v661, 0.0
    %v885 = vmax.f32 %v360, 0.0
    %v886 = vmax.f32 %v362, 0.0
    %v887 = vmax.f32 %v665, 0.0
    %v888 = vmax.f32 %v667, 0.0
    %v889 = vmax.f32 %v366, 0.0
    %v890 = vmax.f32 %v368, 0.0
    %v891 = vmax.f32 %v671, 0.0
    %v892 = vmax.f32 %v673, 0.0
    %v893 = vmax.f32 %v372, 0.0
    %v894 = vmax.f32 %v374, 0.0
    %v895 = vmax.f32 %v677, 0.0
    %v896 = vmax.f32 %v679, 0.0
    %v897 = vmax.f32 %v378, 0.0
    %v898 = vmax.f32 %v380, 0.0
    %v899 = vmax.f32 %v683, 0.0
    %v900 = vmax.f32 %v685, 0.0
    %v901 = vmax.f32 %v384, 0.0
    %v902 = vmax.f32 %v386, 0.0
    %v903 = vmax.f32 %v689, 0.0
    %v904 = vmax.f32 %v691, 0.0
    %v905 = vmax.f32 %v390, 0.0
    %v906 = vmax.f32 %v392, 0.0
    %v907 = vmax.f32 %v695, 0.0
    %v908 = vmax.f32 %v697, 0.0
    %v909 = vmax.f32 %v396, 0.0
    %v910 = vmax.f32 %v398, 0.0
    %v911 = vmax.f32 %v701, 0.0
    %v912 = vmax.f32 %v703, 0.0
    %v913 = vmax.f32 %v402, 0.0
    %v914 = vmax.f32 %v404, 0.0
    %v915 = vmax.f32 %v707, 0.0
    %v916 = vmax.f32 %v709, 0.0
    %v917 = vmax.f32 %v408, 0.0
    %v918 = vmax.f32 %v410, 0.0
    %v919 = vmax.f32 %v713, 0.0
    %v920 = vmax.f32 %v715, 0.0
    %v921 = vmax.f32 %v414, 0.0
    %v922 = vmax.f32 %v416, 0.0
    %v923 = vmax.f32 %v719, 0.0
    %v924 = vmax.f32 %v721, 0.0
    %v925 = vmax.f32 %v420, 0.0
    %v926 = vmax.f32 %v422, 0.0
    %v927 = vmax.f32 %v725, 0.0
    %v928 = vmax.f32 %v727, 0.0
    %v929 = vmax.f32 %v426, 0.0
    %v930 = vmax.f32 %v428, 0.0
    %v931 = vmax.f32 %v731, 0.0
    %v932 = vmax.f32 %v733, 0.0
    %v933 = vmax.f32 %v432, 0.0
    %v934 = vmax.f32 %v434, 0.0
    %v935 = vmax.f32 %v737, 0.0
    %v936 = vmax.f32 %v739, 0.0
    %v937 = vmax.f32 %v438, 0.0
    %v938 = vmax.f32 %v440, 0.0
    %v939 = vmax.f32 %v743, 0.0
    %v940 = vmax.f32 %v745, 0.0
    %v941 = vmax.f32 %v444, 0.0
    %v942 = vmax.f32 %v446, 0.0
    %v943 = vmax.f32 %v749, 0.0
    %v944 = vmax.f32 %v751, 0.0
    %v945 = vmax.f32 %v450, 0.0
    %v946 = vmax.f32 %v452, 0.0
    %v947 = vmax.f32 %v755, 0.0
    %v948 = vmax.f32 %v757, 0.0
    %v949 = vmax.f32 %v456, 0.0
    %v950 = vmax.f32 %v458, 0.0
    %v951 = vmax.f32 %v761, 0.0
    %v952 = vmax.f32 %v763, 0.0
    %v953 = vmax.f32 %v462, 0.0
    %v954 = vmax.f32 %v464, 0.0
    %v955 = vmax.f32 %v767, 0.0
    %v956 = vmax.f32 %v769, 0.0
    %v957 = vmax.f32 %v468, 0.0
    %v958 = vmax.f32 %v470, 0.0
    %v959 = vmax.f32 %v773, 0.0
    %v960 = vmax.f32 %v775, 0.0
    %v961 = vmax.f32 %v474, 0.0
    %v962 = vmax.f32 %v476, 0.0
    %v963 = vmax.f32 %v779, 0.0
    %v964 = vmax.f32 %v781, 0.0
    %v965 = vmax.f32 %v480, 0.0
    %v966 = vmax.f32 %v482, 0.0
    %v967 = vmax.f32 %v785, 0.0
    %v968 = vmax.f32 %v787, 0.0
    %v969 = vmax.f32 %v486, 0.0
    %v970 = vmax.f32 %v488, 0.0
    %v971 = vmax.f32 %v791, 0.0
    %v972 = vmax.f32 %v793, 0.0
    %v973 = vmax.f32 %v492, 0.0
    %v974 = vmax.f32 %v494, 0.0
    %v975 = vmax.f32 %v797, 0.0
    %v976 = vmax.f32 %v799, 0.0
    %v977 = vmax.f32 %v498, 0.0
    %v978 = vmax.f32 %v500, 0.0
    %v979 = vmax.f32 %v803, 0.0
    %v980 = vmax.f32 %v805, 0.0
    %v981 = vmax.f32 %v504, 0.0
    %v982 = vmax.f32 %v506, 0.0
    %v983 = vmax.f32 %v809, 0.0
    %v984 = vmax.f32 %v811, 0.0
    %v985 = vmax.f32 %v510, 0.0
    %v986 = vmax.f32 %v512, 0.0
    %v987 = vmax.f32 %v815, 0.0
    %v988 = vmax.f32 %v817, 0.0
    %v989 = vmax.f32 %v516, 0.0
    %v990 = vmax.f32 %v518, 0.0
    %v991 = vmax.f32 %v821, 0.0
    %v992 = vmax.f32 %v823, 0.0
    %v993 = vmax.f32 %v522, 0.0
    %v994 = vmax.f32 %v524, 0.0
    %v995 = vmax.f32 %v827, 0.0
    %v996 = vmax.f32 %v829, 0.0
    %v997 = vmax.f32 %v528, 0.0
    %v998 = vmax.f32 %v530, 0.0
    %v999 = vmax.f32 %v833, 0.0
    %v1000 = vmax.f32 %v835, 0.0
    %v1001 = vmax.f32 %v534, 0.0
    %v1002 = vmax.f32 %v536, 0.0
    %v1003 = vmax.f32 %v839, 0.0
    %v1004 = vmax.f32 %v841, 0.0
    %v1005 = vmax.f32 %v540, 0.0
    %v1006 = vmax.f32 %v542, 0.0
    %v1007 = vmax.f32 %v845, 0.0
    %v1008 = vmax.f32 %v847, 0.0
    %v1009 = vld [vmem:[#allocation2] sm:$0xff]
    %v1010 = vld [vmem:[#allocation2 + $0x8] sm:$0xff]
    %v1011 = vld [vmem:[#allocation2 + $0x10] sm:$0xff]
    %v1012 = vld [vmem:[#allocation2 + $0x18] sm:$0xff]
    %v1013 = vld [vmem:[#allocation2 + $0x20] sm:$0xff]
    %v1014 = vld [vmem:[#allocation2 + $0x28] sm:$0xff]
    %v1015 = vld [vmem:[#allocation2 + $0x30] sm:$0xff]
    %v1016 = vld [vmem:[#allocation2 + $0x38] sm:$0xff]
    %v1017 = vld [vmem:[#allocation2 + $0x40] sm:$0xff]
    %v1018 = vld [vmem:[#allocation2 + $0x48] sm:$0xff]
    %v1019 = vld [vmem:[#allocation2 + $0x50] sm:$0xff]
    %v1020 = vld [vmem:[#allocation2 + $0x58] sm:$0xff]
    %v1021 = vld [vmem:[#allocation2 + $0x60] sm:$0xff]
    %v1022 = vld [vmem:[#allocation2 + $0x68] sm:$0xff]
    %v1023 = vld [vmem:[#allocation2 + $0x70] sm:$0xff]
    %v1024 = vld [vmem:[#allocation2 + $0x78] sm:$0xff]
    %v1025 = vld [vmem:[#allocation2 + $0x80] sm:$0xff]
    %v1026 = vld [vmem:[#allocation2 + $0x88] sm:$0xff]
    %v1027 = vld [vmem:[#allocation2 + $0x90] sm:$0xff]
    %v1028 = vld [vmem:[#allocation2 + $0x98] sm:$0xff]
    %v1029 = vld [vmem:[#allocation2 + $0xa0] sm:$0xff]
    %v1030 = vld [vmem:[#allocation2 + $0xa8] sm:$0xff]
    %v1031 = vld [vmem:[#allocation2 + $0xb0] sm:$0xff]
    %v1032 = vld [vmem:[#allocation2 + $0xb8] sm:$0xff]
    %v1033 = vld [vmem:[#allocation2 + $0xc0] sm:$0xff]
    %v1034 = vld [vmem:[#allocation2 + $0xc8] sm:$0xff]
    %v1035 = vld [vmem:[#allocation2 + $0xd0] sm:$0xff]
    %v1036 = vld [vmem:[#allocation2 + $0xd8] sm:$0xff]
    %v1037 = vld [vmem:[#allocation2 + $0xe0] sm:$0xff]
    %v1038 = vld [vmem:[#allocation2 + $0xe8] sm:$0xff]
    %v1039 = vld [vmem:[#allocation2 + $0xf0] sm:$0xff]
    %v1040 = vld [vmem:[#allocation2 + $0xf8] sm:$0xff]
    %v1041 = vld [vmem:[#allocation2 + $0x100] sm:$0xff]
    %v1042 = vld [vmem:[#allocation2 + $0x108] sm:$0xff]
    %v1043 = vld [vmem:[#allocation2 + $0x110] sm:$0xff]
    %v1044 = vld [vmem:[#allocation2 + $0x118] sm:$0xff]
    %v1045 = vld [vmem:[#allocation2 + $0x120] sm:$0xff]
    %v1046 = vld [vmem:[#allocation2 + $0x128] sm:$0xff]
    %v1047 = vld [vmem:[#allocation2 + $0x130] sm:$0xff]
    %v1048 = vld [vmem:[#allocation2 + $0x138] sm:$0xff]
    %v1049 = vld [vmem:[#allocation2 + $0x140] sm:$0xff]
    %v1050 = vld [vmem:[#allocation2 + $0x148] sm:$0xff]
    %v1051 = vld [vmem:[#allocation2 + $0x150] sm:$0xff]
    %v1052 = vld [vmem:[#allocation2 + $0x158] sm:$0xff]
    %v1053 = vld [vmem:[#allocation2 + $0x160] sm:$0xff]
    %v1054 = vld [vmem:[#allocation2 + $0x168] sm:$0xff]
    %v1055 = vld [vmem:[#allocation2 + $0x170] sm:$0xff]
    %v1056 = vld [vmem:[#allocation2 + $0x178] sm:$0xff]
    %v1057 = vld [vmem:[#allocation2 + $0x180] sm:$0xff]
    %v1058 = vld [vmem:[#allocation2 + $0x188] sm:$0xff]
    %v1059 = vld [vmem:[#allocation2 + $0x190] sm:$0xff]
    %v1060 = vld [vmem:[#allocation2 + $0x198] sm:$0xff]
    %v1061 = vld [vmem:[#allocation2 + $0x1a0] sm:$0xff]
    %v1062 = vld [vmem:[#allocation2 + $0x1a8] sm:$0xff]
    %v1063 = vld [vmem:[#allocation2 + $0x1b0] sm:$0xff]
    %v1064 = vld [vmem:[#allocation2 + $0x1b8] sm:$0xff]
    %v1065 = vld [vmem:[#allocation2 + $0x1c0] sm:$0xff]
    %v1066 = vld [vmem:[#allocation2 + $0x1c8] sm:$0xff]
    %v1067 = vld [vmem:[#allocation2 + $0x1d0] sm:$0xff]
    %v1068 = vld [vmem:[#allocation2 + $0x1d8] sm:$0xff]
    %v1069 = vld [vmem:[#allocation2 + $0x1e0] sm:$0xff]
    %v1070 = vld [vmem:[#allocation2 + $0x1e8] sm:$0xff]
    %v1071 = vld [vmem:[#allocation2 + $0x1f0] sm:$0xff]
    %v1072 = vld [vmem:[#allocation2 + $0x1f8] sm:$0xff]
    %v1073 = vld [vmem:[%s4] sm:$0x3]
    %v1075 = vlaneseq
    %v1076 = vshrl.u32 %v1075, 7
    %v1077 = vsub.s32 0, %v1076
    %v1078 = vrot.slane %v1073, %v1077
    %v1079 = vlaneseq
    %v1080 = vshrl.u32 %v1079, 7
    %v1081 = vsub.s32 1, %v1080
    %v1082 = vrot.slane %v1073, %v1081
    %1085 = vmatprep.subr.mxu0 %v1010
    %1086 = vmatpush1.msra.mxu0 %v1009
    %1087 = vmatprep.subr.mxu0 %v1012
    %1088 = vmatpush1.msra.mxu0 %v1011
    %1089 = vmatprep.subr.mxu0 %v1014
    %1090 = vmatpush1.msra.mxu0 %v1013
    %1091 = vmatprep.subr.mxu0 %v1016
    %1092 = vmatpush1.msra.mxu0 %v1015
    %1093 = vmatprep.subr.mxu0 %v1018
    %1094 = vmatpush1.msra.mxu0 %v1017
    %1095 = vmatprep.subr.mxu0 %v1020
    %1096 = vmatpush1.msra.mxu0 %v1019
    %1097 = vmatprep.subr.mxu0 %v1022
    %1098 = vmatpush1.msra.mxu0 %v1021
    %1099 = vmatprep.subr.mxu0 %v1024
    %1100 = vmatpush1.msra.mxu0 %v1023
    %1101 = vmatprep.subr.mxu0 %v1026
    %1102 = vmatpush1.msra.mxu0 %v1025
    %1103 = vmatprep.subr.mxu0 %v1028
    %1104 = vmatpush1.msra.mxu0 %v1027
    %1105 = vmatprep.subr.mxu0 %v1030
    %1106 = vmatpush1.msra.mxu0 %v1029
    %1107 = vmatprep.subr.mxu0 %v1032
    %1108 = vmatpush1.msra.mxu0 %v1031
    %1109 = vmatprep.subr.mxu0 %v1034
    %1110 = vmatpush1.msra.mxu0 %v1033
    %1111 = vmatprep.subr.mxu0 %v1036
    %1112 = vmatpush1.msra.mxu0 %v1035
    %1113 = vmatprep.subr.mxu0 %v1038
    %1114 = vmatpush1.msra.mxu0 %v1037
    %1115 = vmatprep.subr.mxu0 %v1040
    %1116 = vmatpush1.msra.mxu0 %v1039
    %1117 = vmatprep.subr.mxu0 %v1042
    %1118 = vmatpush1.msra.mxu0 %v1041
    %1119 = vmatprep.subr.mxu0 %v1044
    %1120 = vmatpush1.msra.mxu0 %v1043
    %1121 = vmatprep.subr.mxu0 %v1046
    %1122 = vmatpush1.msra.mxu0 %v1045
    %1123 = vmatprep.subr.mxu0 %v1048
    %1124 = vmatpush1.msra.mxu0 %v1047
    %1125 = vmatprep.subr.mxu0 %v1050
    %1126 = vmatpush1.msra.mxu0 %v1049
    %1127 = vmatprep.subr.mxu0 %v1052
    %1128 = vmatpush1.msra.mxu0 %v1051
    %1129 = vmatprep.subr.mxu0 %v1054
    %1130 = vmatpush1.msra.mxu0 %v1053
    %1131 = vmatprep.subr.mxu0 %v1056
    %1132 = vmatpush1.msra.mxu0 %v1055
    %1133 = vmatprep.subr.mxu0 %v1058
    %1134 = vmatpush1.msra.mxu0 %v1057
    %1135 = vmatprep.subr.mxu0 %v1060
    %1136 = vmatpush1.msra.mxu0 %v1059
    %1137 = vmatprep.subr.mxu0 %v1062
    %1138 = vmatpush1.msra.mxu0 %v1061
    %1139 = vmatprep.subr.mxu0 %v1064
    %1140 = vmatpush1.msra.mxu0 %v1063
    %1141 = vmatprep.subr.mxu0 %v1066
    %1142 = vmatpush1.msra.mxu0 %v1065
    %1143 = vmatprep.subr.mxu0 %v1068
    %1144 = vmatpush1.msra.mxu0 %v1067
    %1145 = vmatprep.subr.mxu0 %v1070
    %1146 = vmatpush1.msra.mxu0 %v1069
    %1147 = vmatprep.subr.mxu0 %v1072
    %1148 = vmatpush1.msra.mxu0 %v1071
    %1149 = vmatprep.mubr.f32.mxu0 %v850
    %1150 = vmatmul.mubr.f32.gmra.mrb[0].mxu0 %v849
    %v1151 = vpop.f32.mrb[0].mxu0
    %v1152 = vadd.f32 %v1078, %v1151
    %v1153 = vpop.f32.mrb[0].mxu0
    %v1154 = vadd.f32 %v1082, %v1153
    %1155 = vmatprep.mubr.f32.mxu0 %v854
    %1156 = vmatmul.mubr.f32.gmra.mrb[0].mxu0 %v853
    %v1157 = vpop.f32.mrb[0].mxu0
    %v1158 = vadd.f32 %v1078, %v1157
    %v1159 = vpop.f32.mrb[0].mxu0
    %v1160 = vadd.f32 %v1082, %v1159
    %1161 = vmatprep.mubr.f32.mxu0 %v858
    %1162 = vmatmul.mubr.f32.gmra.mrb[0].mxu0 %v857
    %v1163 = vpop.f32.mrb[0].mxu0
    %v1164 = vadd.f32 %v1078, %v1163
    %v1165 = vpop.f32.mrb[0].mxu0
    %v1166 = vadd.f32 %v1082, %v1165
    %1167 = vmatprep.mubr.f32.mxu0 %v862
    %1168 = vmatmul.mubr.f32.gmra.mrb[0].mxu0 %v861
    %v1169 = vpop.f32.mrb[0].mxu0
    %v1170 = vadd.f32 %v1078, %v1169
    %v1171 = vpop.f32.mrb[0].mxu0
    %v1172 = vadd.f32 %v1082, %v1171
    %1173 = vmatprep.mubr.f32.mxu0 %v866
    %1174 = vmatmul.mubr.f32.gmra.mrb[0].mxu0 %v865
    %v1175 = vpop.f32.mrb[0].mxu0
    %v1176 = vadd.f32 %v1078, %v1175
    %v1177 = vpop.f32.mrb[0].mxu0
    %v1178 = vadd.f32 %v1082, %v1177
    %1179 = vmatprep.mubr.f32.mxu0 %v870
    %1180 = vmatmul.mubr.f32.gmra.mrb[0].mxu0 %v869
    %v1181 = vpop.f32.mrb[0].mxu0
    %v1182 = vadd.f32 %v1078, %v1181
    %v1183 = vpop.f32.mrb[0].mxu0
    %v1184 = vadd.f32 %v1082, %v1183
    %1185 = vmatprep.mubr.f32.mxu0 %v874
    %1186 = vmatmul.mubr.f32.gmra.mrb[0].mxu0 %v873
    %v1187 = vpop.f32.mrb[0].mxu0
    %v1188 = vadd.f32 %v1078, %v1187
    %v1189 = vpop.f32.mrb[0].mxu0
    %v1190 = vadd.f32 %v1082, %v1189
    %1191 = vmatprep.mubr.f32.mxu0 %v878
    %1192 = vmatmul.mubr.f32.gmra.mrb[0].mxu0 %v877
    %v1193 = vpop.f32.mrb[0].mxu0
    %v1194 = vadd.f32 %v1078, %v1193
    %v1195 = vpop.f32.mrb[0].mxu0
    %v1196 = vadd.f32 %v1082, %v1195
    %1197 = vmatprep.mubr.f32.mxu0 %v882
    %1198 = vmatmul.mubr.f32.gmra.mrb[0].mxu0 %v881
    %v1199 = vpop.f32.mrb[0].mxu0
    %v1200 = vadd.f32 %v1078, %v1199
    %v1201 = vpop.f32.mrb[0].mxu0
    %v1202 = vadd.f32 %v1082, %v1201
    %1203 = vmatprep.mubr.f32.mxu0 %v886
    %1204 = vmatmul.mubr.f32.gmra.mrb[0].mxu0 %v885
    %v1205 = vpop.f32.mrb[0].mxu0
    %v1206 = vadd.f32 %v1078, %v1205
    %v1207 = vpop.f32.mrb[0].mxu0
    %v1208 = vadd.f32 %v1082, %v1207
    %1209 = vmatprep.mubr.f32.mxu0 %v890
    %1210 = vmatmul.mubr.f32.gmra.mrb[0].mxu0 %v889
    %v1211 = vpop.f32.mrb[0].mxu0
    %v1212 = vadd.f32 %v1078, %v1211
    %v1213 = vpop.f32.mrb[0].mxu0
    %v1214 = vadd.f32 %v1082, %v1213
    %1215 = vmatprep.mubr.f32.mxu0 %v894
    %1216 = vmatmul.mubr.f32.gmra.mrb[0].mxu0 %v893
    %v1217 = vpop.f32.mrb[0].mxu0
    %v1218 = vadd.f32 %v1078, %v1217
    %v1219 = vpop.f32.mrb[0].mxu0
    %v1220 = vadd.f32 %v1082, %v1219
    %1221 = vmatprep.mubr.f32.mxu0 %v898
    %1222 = vmatmul.mubr.f32.gmra.mrb[0].mxu0 %v897
    %v1223 = vpop.f32.mrb[0].mxu0
    %v1224 = vadd.f32 %v1078, %v1223
    %v1225 = vpop.f32.mrb[0].mxu0
    %v1226 = vadd.f32 %v1082, %v1225
    %1227 = vmatprep.mubr.f32.mxu0 %v902
    %1228 = vmatmul.mubr.f32.gmra.mrb[0].mxu0 %v901
    %v1229 = vpop.f32.mrb[0].mxu0
    %v1230 = vadd.f32 %v1078, %v1229
    %v1231 = vpop.f32.mrb[0].mxu0
    %v1232 = vadd.f32 %v1082, %v1231
    %1233 = vmatprep.mubr.f32.mxu0 %v906
    %1234 = vmatmul.mubr.f32.gmra.mrb[0].mxu0 %v905
    %v1235 = vpop.f32.mrb[0].mxu0
    %v1236 = vadd.f32 %v1078, %v1235
    %v1237 = vpop.f32.mrb[0].mxu0
    %v1238 = vadd.f32 %v1082, %v1237
    %1239 = vmatprep.mubr.f32.mxu0 %v910
    %1240 = vmatmul.mubr.f32.gmra.mrb[0].mxu0 %v909
    %v1241 = vpop.f32.mrb[0].mxu0
    %v1242 = vadd.f32 %v1078, %v1241
    %v1243 = vpop.f32.mrb[0].mxu0
    %v1244 = vadd.f32 %v1082, %v1243
    %1245 = vmatprep.mubr.f32.mxu0 %v914
    %1246 = vmatmul.mubr.f32.gmra.mrb[0].mxu0 %v913
    %v1247 = vpop.f32.mrb[0].mxu0
    %v1248 = vadd.f32 %v1078, %v1247
    %v1249 = vpop.f32.mrb[0].mxu0
    %v1250 = vadd.f32 %v1082, %v1249
    %1251 = vmatprep.mubr.f32.mxu0 %v918
    %1252 = vmatmul.mubr.f32.gmra.mrb[0].mxu0 %v917
    %v1253 = vpop.f32.mrb[0].mxu0
    %v1254 = vadd.f32 %v1078, %v1253
    %v1255 = vpop.f32.mrb[0].mxu0
    %v1256 = vadd.f32 %v1082, %v1255
    %1257 = vmatprep.mubr.f32.mxu0 %v922
    %1258 = vmatmul.mubr.f32.gmra.mrb[0].mxu0 %v921
    %v1259 = vpop.f32.mrb[0].mxu0
    %v1260 = vadd.f32 %v1078, %v1259
    %v1261 = vpop.f32.mrb[0].mxu0
    %v1262 = vadd.f32 %v1082, %v1261
    %1263 = vmatprep.mubr.f32.mxu0 %v926
    %1264 = vmatmul.mubr.f32.gmra.mrb[0].mxu0 %v925
    %v1265 = vpop.f32.mrb[0].mxu0
    %v1266 = vadd.f32 %v1078, %v1265
    %v1267 = vpop.f32.mrb[0].mxu0
    %v1268 = vadd.f32 %v1082, %v1267
    %1269 = vmatprep.mubr.f32.mxu0 %v930
    %1270 = vmatmul.mubr.f32.gmra.mrb[0].mxu0 %v929
    %v1271 = vpop.f32.mrb[0].mxu0
    %v1272 = vadd.f32 %v1078, %v1271
    %v1273 = vpop.f32.mrb[0].mxu0
    %v1274 = vadd.f32 %v1082, %v1273
    %1275 = vmatprep.mubr.f32.mxu0 %v934
    %1276 = vmatmul.mubr.f32.gmra.mrb[0].mxu0 %v933
    %v1277 = vpop.f32.mrb[0].mxu0
    %v1278 = vadd.f32 %v1078, %v1277
    %v1279 = vpop.f32.mrb[0].mxu0
    %v1280 = vadd.f32 %v1082, %v1279
    %1281 = vmatprep.mubr.f32.mxu0 %v938
    %1282 = vmatmul.mubr.f32.gmra.mrb[0].mxu0 %v937
    %v1283 = vpop.f32.mrb[0].mxu0
    %v1284 = vadd.f32 %v1078, %v1283
    %v1285 = vpop.f32.mrb[0].mxu0
    %v1286 = vadd.f32 %v1082, %v1285
    %1287 = vmatprep.mubr.f32.mxu0 %v942
    %1288 = vmatmul.mubr.f32.gmra.mrb[0].mxu0 %v941
    %v1289 = vpop.f32.mrb[0].mxu0
    %v1290 = vadd.f32 %v1078, %v1289
    %v1291 = vpop.f32.mrb[0].mxu0
    %v1292 = vadd.f32 %v1082, %v1291
    %1293 = vmatprep.mubr.f32.mxu0 %v946
    %1294 = vmatmul.mubr.f32.gmra.mrb[0].mxu0 %v945
    %v1295 = vpop.f32.mrb[0].mxu0
    %v1296 = vadd.f32 %v1078, %v1295
    %v1297 = vpop.f32.mrb[0].mxu0
    %v1298 = vadd.f32 %v1082, %v1297
    %1299 = vmatprep.mubr.f32.mxu0 %v950
    %1300 = vmatmul.mubr.f32.gmra.mrb[0].mxu0 %v949
    %v1301 = vpop.f32.mrb[0].mxu0
    %v1302 = vadd.f32 %v1078, %v1301
    %v1303 = vpop.f32.mrb[0].mxu0
    %v1304 = vadd.f32 %v1082, %v1303
    %1305 = vmatprep.mubr.f32.mxu0 %v954
    %1306 = vmatmul.mubr.f32.gmra.mrb[0].mxu0 %v953
    %v1307 = vpop.f32.mrb[0].mxu0
    %v1308 = vadd.f32 %v1078, %v1307
    %v1309 = vpop.f32.mrb[0].mxu0
    %v1310 = vadd.f32 %v1082, %v1309
    %1311 = vmatprep.mubr.f32.mxu0 %v958
    %1312 = vmatmul.mubr.f32.gmra.mrb[0].mxu0 %v957
    %v1313 = vpop.f32.mrb[0].mxu0
    %v1314 = vadd.f32 %v1078, %v1313
    %v1315 = vpop.f32.mrb[0].mxu0
    %v1316 = vadd.f32 %v1082, %v1315
    %1317 = vmatprep.mubr.f32.mxu0 %v962
    %1318 = vmatmul.mubr.f32.gmra.mrb[0].mxu0 %v961
    %v1319 = vpop.f32.mrb[0].mxu0
    %v1320 = vadd.f32 %v1078, %v1319
    %v1321 = vpop.f32.mrb[0].mxu0
    %v1322 = vadd.f32 %v1082, %v1321
    %1323 = vmatprep.mubr.f32.mxu0 %v966
    %1324 = vmatmul.mubr.f32.gmra.mrb[0].mxu0 %v965
    %v1325 = vpop.f32.mrb[0].mxu0
    %v1326 = vadd.f32 %v1078, %v1325
    %v1327 = vpop.f32.mrb[0].mxu0
    %v1328 = vadd.f32 %v1082, %v1327
    %1329 = vmatprep.mubr.f32.mxu0 %v970
    %1330 = vmatmul.mubr.f32.gmra.mrb[0].mxu0 %v969
    %v1331 = vpop.f32.mrb[0].mxu0
    %v1332 = vadd.f32 %v1078, %v1331
    %v1333 = vpop.f32.mrb[0].mxu0
    %v1334 = vadd.f32 %v1082, %v1333
    %1335 = vmatprep.mubr.f32.mxu0 %v974
    %1336 = vmatmul.mubr.f32.gmra.mrb[0].mxu0 %v973
    %v1337 = vpop.f32.mrb[0].mxu0
    %v1338 = vadd.f32 %v1078, %v1337
    %v1339 = vpop.f32.mrb[0].mxu0
    %v1340 = vadd.f32 %v1082, %v1339
    %1341 = vmatprep.mubr.f32.mxu0 %v978
    %1342 = vmatmul.mubr.f32.gmra.mrb[0].mxu0 %v977
    %v1343 = vpop.f32.mrb[0].mxu0
    %v1344 = vadd.f32 %v1078, %v1343
    %v1345 = vpop.f32.mrb[0].mxu0
    %v1346 = vadd.f32 %v1082, %v1345
    %1347 = vmatprep.mubr.f32.mxu0 %v982
    %1348 = vmatmul.mubr.f32.gmra.mrb[0].mxu0 %v981
    %v1349 = vpop.f32.mrb[0].mxu0
    %v1350 = vadd.f32 %v1078, %v1349
    %v1351 = vpop.f32.mrb[0].mxu0
    %v1352 = vadd.f32 %v1082, %v1351
    %1353 = vmatprep.mubr.f32.mxu0 %v986
    %1354 = vmatmul.mubr.f32.gmra.mrb[0].mxu0 %v985
    %v1355 = vpop.f32.mrb[0].mxu0
    %v1356 = vadd.f32 %v1078, %v1355
    %v1357 = vpop.f32.mrb[0].mxu0
    %v1358 = vadd.f32 %v1082, %v1357
    %1359 = vmatprep.mubr.f32.mxu0 %v990
    %1360 = vmatmul.mubr.f32.gmra.mrb[0].mxu0 %v989
    %v1361 = vpop.f32.mrb[0].mxu0
    %v1362 = vadd.f32 %v1078, %v1361
    %v1363 = vpop.f32.mrb[0].mxu0
    %v1364 = vadd.f32 %v1082, %v1363
    %1365 = vmatprep.mubr.f32.mxu0 %v994
    %1366 = vmatmul.mubr.f32.gmra.mrb[0].mxu0 %v993
    %v1367 = vpop.f32.mrb[0].mxu0
    %v1368 = vadd.f32 %v1078, %v1367
    %v1369 = vpop.f32.mrb[0].mxu0
    %v1370 = vadd.f32 %v1082, %v1369
    %1371 = vmatprep.mubr.f32.mxu0 %v998
    %1372 = vmatmul.mubr.f32.gmra.mrb[0].mxu0 %v997
    %v1373 = vpop.f32.mrb[0].mxu0
    %v1374 = vadd.f32 %v1078, %v1373
    %v1375 = vpop.f32.mrb[0].mxu0
    %v1376 = vadd.f32 %v1082, %v1375
    %1377 = vmatprep.mubr.f32.mxu0 %v1002
    %1378 = vmatmul.mubr.f32.gmra.mrb[0].mxu0 %v1001
    %v1379 = vpop.f32.mrb[0].mxu0
    %v1380 = vadd.f32 %v1078, %v1379
    %v1381 = vpop.f32.mrb[0].mxu0
    %v1382 = vadd.f32 %v1082, %v1381
    %1383 = vmatprep.mubr.f32.mxu0 %v1006
    %1384 = vmatmul.mubr.f32.gmra.mrb[0].mxu0 %v1005
    %v1385 = vpop.f32.mrb[0].mxu0
    %v1386 = vadd.f32 %v1078, %v1385
    %v1387 = vpop.f32.mrb[0].mxu0
    %v1388 = vadd.f32 %v1082, %v1387
    %1389 = vdwg.mxu0
    %v1390 = vmax.f32 %v1152, 0.0
    %v1391 = vmax.f32 %v1154, 0.0
    %v1392 = vmax.f32 %v1158, 0.0
    %v1393 = vmax.f32 %v1160, 0.0
    %v1394 = vmax.f32 %v1164, 0.0
    %v1395 = vmax.f32 %v1166, 0.0
    %v1396 = vmax.f32 %v1170, 0.0
    %v1397 = vmax.f32 %v1172, 0.0
    %v1398 = vmax.f32 %v1176, 0.0
    %v1399 = vmax.f32 %v1178, 0.0
    %v1400 = vmax.f32 %v1182, 0.0
    %v1401 = vmax.f32 %v1184, 0.0
    %v1402 = vmax.f32 %v1188, 0.0
    %v1403 = vmax.f32 %v1190, 0.0
    %v1404 = vmax.f32 %v1194, 0.0
    %v1405 = vmax.f32 %v1196, 0.0
    %v1406 = vmax.f32 %v1200, 0.0
    %v1407 = vmax.f32 %v1202, 0.0
    %v1408 = vmax.f32 %v1206, 0.0
    %v1409 = vmax.f32 %v1208, 0.0
    %v1410 = vmax.f32 %v1212, 0.0
    %v1411 = vmax.f32 %v1214, 0.0
    %v1412 = vmax.f32 %v1218, 0.0
    %v1413 = vmax.f32 %v1220, 0.0
    %v1414 = vmax.f32 %v1224, 0.0
    %v1415 = vmax.f32 %v1226, 0.0
    %v1416 = vmax.f32 %v1230, 0.0
    %v1417 = vmax.f32 %v1232, 0.0
    %v1418 = vmax.f32 %v1236, 0.0
    %v1419 = vmax.f32 %v1238, 0.0
    %v1420 = vmax.f32 %v1242, 0.0
    %v1421 = vmax.f32 %v1244, 0.0
    %v1422 = vmax.f32 %v1248, 0.0
    %v1423 = vmax.f32 %v1250, 0.0
    %v1424 = vmax.f32 %v1254, 0.0
    %v1425 = vmax.f32 %v1256, 0.0
    %v1426 = vmax.f32 %v1260, 0.0
    %v1427 = vmax.f32 %v1262, 0.0
    %v1428 = vmax.f32 %v1266, 0.0
    %v1429 = vmax.f32 %v1268, 0.0
    %v1430 = vmax.f32 %v1272, 0.0
    %v1431 = vmax.f32 %v1274, 0.0
    %v1432 = vmax.f32 %v1278, 0.0
    %v1433 = vmax.f32 %v1280, 0.0
    %v1434 = vmax.f32 %v1284, 0.0
    %v1435 = vmax.f32 %v1286, 0.0
    %v1436 = vmax.f32 %v1290, 0.0
    %v1437 = vmax.f32 %v1292, 0.0
    %v1438 = vmax.f32 %v1296, 0.0
    %v1439 = vmax.f32 %v1298, 0.0
    %v1440 = vmax.f32 %v1302, 0.0
    %v1441 = vmax.f32 %v1304, 0.0
    %v1442 = vmax.f32 %v1308, 0.0
    %v1443 = vmax.f32 %v1310, 0.0
    %v1444 = vmax.f32 %v1314, 0.0
    %v1445 = vmax.f32 %v1316, 0.0
    %v1446 = vmax.f32 %v1320, 0.0
    %v1447 = vmax.f32 %v1322, 0.0
    %v1448 = vmax.f32 %v1326, 0.0
    %v1449 = vmax.f32 %v1328, 0.0
    %v1450 = vmax.f32 %v1332, 0.0
    %v1451 = vmax.f32 %v1334, 0.0
    %v1452 = vmax.f32 %v1338, 0.0
    %v1453 = vmax.f32 %v1340, 0.0
    %v1454 = vmax.f32 %v1344, 0.0
    %v1455 = vmax.f32 %v1346, 0.0
    %v1456 = vmax.f32 %v1350, 0.0
    %v1457 = vmax.f32 %v1352, 0.0
    %v1458 = vmax.f32 %v1356, 0.0
    %v1459 = vmax.f32 %v1358, 0.0
    %v1460 = vmax.f32 %v1362, 0.0
    %v1461 = vmax.f32 %v1364, 0.0
    %v1462 = vmax.f32 %v1368, 0.0
    %v1463 = vmax.f32 %v1370, 0.0
    %v1464 = vmax.f32 %v1374, 0.0
    %v1465 = vmax.f32 %v1376, 0.0
    %v1466 = vmax.f32 %v1380, 0.0
    %v1467 = vmax.f32 %v1382, 0.0
    %v1468 = vmax.f32 %v1386, 0.0
    %v1469 = vmax.f32 %v1388, 0.0
    %v1470 = vld [vmem:[%s5] sm:$0x3]
    %v1472 = vlaneseq
    %v1473 = vshrl.u32 %v1472, 7
    %v1474 = vsub.s32 0, %v1473
    %v1475 = vrot.slane %v1470, %v1474
    %v1476 = vlaneseq
    %v1477 = vshrl.u32 %v1476, 7
    %v1478 = vsub.s32 1, %v1477
    %v1479 = vrot.slane %v1470, %v1478
    %v1482 = vmul.f32 %v1390, %v1475
    %v1483 = vmul.f32 %v1391, %v1479
    %v1484 = vmul.f32 %v1392, %v1475
    %v1485 = vmul.f32 %v1393, %v1479
    %v1486 = vmul.f32 %v1394, %v1475
    %v1487 = vmul.f32 %v1395, %v1479
    %v1488 = vmul.f32 %v1396, %v1475
    %v1489 = vmul.f32 %v1397, %v1479
    %v1490 = vmul.f32 %v1398, %v1475
    %v1491 = vmul.f32 %v1399, %v1479
    %v1492 = vmul.f32 %v1400, %v1475
    %v1493 = vmul.f32 %v1401, %v1479
    %v1494 = vmul.f32 %v1402, %v1475
    %v1495 = vmul.f32 %v1403, %v1479
    %v1496 = vmul.f32 %v1404, %v1475
    %v1497 = vmul.f32 %v1405, %v1479
    %v1498 = vmul.f32 %v1406, %v1475
    %v1499 = vmul.f32 %v1407, %v1479
    %v1500 = vmul.f32 %v1408, %v1475
    %v1501 = vmul.f32 %v1409, %v1479
    %v1502 = vmul.f32 %v1410, %v1475
    %v1503 = vmul.f32 %v1411, %v1479
    %v1504 = vmul.f32 %v1412, %v1475
    %v1505 = vmul.f32 %v1413, %v1479
    %v1506 = vmul.f32 %v1414, %v1475
    %v1507 = vmul.f32 %v1415, %v1479
    %v1508 = vmul.f32 %v1416, %v1475
    %v1509 = vmul.f32 %v1417, %v1479
    %v1510 = vmul.f32 %v1418, %v1475
    %v1511 = vmul.f32 %v1419, %v1479
    %v1512 = vmul.f32 %v1420, %v1475
    %v1513 = vmul.f32 %v1421, %v1479
    %v1514 = vmul.f32 %v1422, %v1475
    %v1515 = vmul.f32 %v1423, %v1479
    %v1516 = vmul.f32 %v1424, %v1475
    %v1517 = vmul.f32 %v1425, %v1479
    %v1518 = vmul.f32 %v1426, %v1475
    %v1519 = vmul.f32 %v1427, %v1479
    %v1520 = vmul.f32 %v1428, %v1475
    %v1521 = vmul.f32 %v1429, %v1479
    %v1522 = vmul.f32 %v1430, %v1475
    %v1523 = vmul.f32 %v1431, %v1479
    %v1524 = vmul.f32 %v1432, %v1475
    %v1525 = vmul.f32 %v1433, %v1479
    %v1526 = vmul.f32 %v1434, %v1475
    %v1527 = vmul.f32 %v1435, %v1479
    %v1528 = vmul.f32 %v1436, %v1475
    %v1529 = vmul.f32 %v1437, %v1479
    %v1530 = vmul.f32 %v1438, %v1475
    %v1531 = vmul.f32 %v1439, %v1479
    %v1532 = vmul.f32 %v1440, %v1475
    %v1533 = vmul.f32 %v1441, %v1479
    %v1534 = vmul.f32 %v1442, %v1475
    %v1535 = vmul.f32 %v1443, %v1479
    %v1536 = vmul.f32 %v1444, %v1475
    %v1537 = vmul.f32 %v1445, %v1479
    %v1538 = vmul.f32 %v1446, %v1475
    %v1539 = vmul.f32 %v1447, %v1479
    %v1540 = vmul.f32 %v1448, %v1475
    %v1541 = vmul.f32 %v1449, %v1479
    %v1542 = vmul.f32 %v1450, %v1475
    %v1543 = vmul.f32 %v1451, %v1479
    %v1544 = vmul.f32 %v1452, %v1475
    %v1545 = vmul.f32 %v1453, %v1479
    %v1546 = vmul.f32 %v1454, %v1475
    %v1547 = vmul.f32 %v1455, %v1479
    %v1548 = vmul.f32 %v1456, %v1475
    %v1549 = vmul.f32 %v1457, %v1479
    %v1550 = vmul.f32 %v1458, %v1475
    %v1551 = vmul.f32 %v1459, %v1479
    %v1552 = vmul.f32 %v1460, %v1475
    %v1553 = vmul.f32 %v1461, %v1479
    %v1554 = vmul.f32 %v1462, %v1475
    %v1555 = vmul.f32 %v1463, %v1479
    %v1556 = vmul.f32 %v1464, %v1475
    %v1557 = vmul.f32 %v1465, %v1479
    %v1558 = vmul.f32 %v1466, %v1475
    %v1559 = vmul.f32 %v1467, %v1479
    %v1560 = vmul.f32 %v1468, %v1475
    %v1561 = vmul.f32 %v1469, %v1479
    %v1562 = vadd.f32 %v1482, %v1483
    %1563 = vadd.xlane.f32.xlu0 %v1562
    %v1564 = vpop.xlane.xlu0 %1563
    %v1565 = vadd.f32 %v1484, %v1485
    %1566 = vadd.xlane.f32.xlu0 %v1565
    %v1567 = vpop.xlane.xlu0 %1566
    %v1568 = vadd.f32 %v1486, %v1487
    %1569 = vadd.xlane.f32.xlu0 %v1568
    %v1570 = vpop.xlane.xlu0 %1569
    %v1571 = vadd.f32 %v1488, %v1489
    %1572 = vadd.xlane.f32.xlu0 %v1571
    %v1573 = vpop.xlane.xlu0 %1572
    %v1574 = vadd.f32 %v1490, %v1491
    %1575 = vadd.xlane.f32.xlu0 %v1574
    %v1576 = vpop.xlane.xlu0 %1575
    %v1577 = vadd.f32 %v1492, %v1493
    %1578 = vadd.xlane.f32.xlu0 %v1577
    %v1579 = vpop.xlane.xlu0 %1578
    %v1580 = vadd.f32 %v1494, %v1495
    %1581 = vadd.xlane.f32.xlu0 %v1580
    %v1582 = vpop.xlane.xlu0 %1581
    %v1583 = vadd.f32 %v1496, %v1497
    %1584 = vadd.xlane.f32.xlu0 %v1583
    %v1585 = vpop.xlane.xlu0 %1584
    %v1586 = vadd.f32 %v1498, %v1499
    %1587 = vadd.xlane.f32.xlu0 %v1586
    %v1588 = vpop.xlane.xlu0 %1587
    %v1589 = vadd.f32 %v1500, %v1501
    %1590 = vadd.xlane.f32.xlu0 %v1589
    %v1591 = vpop.xlane.xlu0 %1590
    %v1592 = vadd.f32 %v1502, %v1503
    %1593 = vadd.xlane.f32.xlu0 %v1592
    %v1594 = vpop.xlane.xlu0 %1593
    %v1595 = vadd.f32 %v1504, %v1505
    %1596 = vadd.xlane.f32.xlu0 %v1595
    %v1597 = vpop.xlane.xlu0 %1596
    %v1598 = vadd.f32 %v1506, %v1507
    %1599 = vadd.xlane.f32.xlu0 %v1598
    %v1600 = vpop.xlane.xlu0 %1599
    %v1601 = vadd.f32 %v1508, %v1509
    %1602 = vadd.xlane.f32.xlu0 %v1601
    %v1603 = vpop.xlane.xlu0 %1602
    %v1604 = vadd.f32 %v1510, %v1511
    %1605 = vadd.xlane.f32.xlu0 %v1604
    %v1606 = vpop.xlane.xlu0 %1605
    %v1607 = vadd.f32 %v1512, %v1513
    %1608 = vadd.xlane.f32.xlu0 %v1607
    %v1609 = vpop.xlane.xlu0 %1608
    %v1610 = vadd.f32 %v1514, %v1515
    %1611 = vadd.xlane.f32.xlu0 %v1610
    %v1612 = vpop.xlane.xlu0 %1611
    %v1613 = vadd.f32 %v1516, %v1517
    %1614 = vadd.xlane.f32.xlu0 %v1613
    %v1615 = vpop.xlane.xlu0 %1614
    %v1616 = vadd.f32 %v1518, %v1519
    %1617 = vadd.xlane.f32.xlu0 %v1616
    %v1618 = vpop.xlane.xlu0 %1617
    %v1619 = vadd.f32 %v1520, %v1521
    %1620 = vadd.xlane.f32.xlu0 %v1619
    %v1621 = vpop.xlane.xlu0 %1620
    %v1622 = vadd.f32 %v1522, %v1523
    %1623 = vadd.xlane.f32.xlu0 %v1622
    %v1624 = vpop.xlane.xlu0 %1623
    %v1625 = vadd.f32 %v1524, %v1525
    %1626 = vadd.xlane.f32.xlu0 %v1625
    %v1627 = vpop.xlane.xlu0 %1626
    %v1628 = vadd.f32 %v1526, %v1527
    %1629 = vadd.xlane.f32.xlu0 %v1628
    %v1630 = vpop.xlane.xlu0 %1629
    %v1631 = vadd.f32 %v1528, %v1529
    %1632 = vadd.xlane.f32.xlu0 %v1631
    %v1633 = vpop.xlane.xlu0 %1632
    %v1634 = vadd.f32 %v1530, %v1531
    %1635 = vadd.xlane.f32.xlu0 %v1634
    %v1636 = vpop.xlane.xlu0 %1635
    %v1637 = vadd.f32 %v1532, %v1533
    %1638 = vadd.xlane.f32.xlu0 %v1637
    %v1639 = vpop.xlane.xlu0 %1638
    %v1640 = vadd.f32 %v1534, %v1535
    %1641 = vadd.xlane.f32.xlu0 %v1640
    %v1642 = vpop.xlane.xlu0 %1641
    %v1643 = vadd.f32 %v1536, %v1537
    %1644 = vadd.xlane.f32.xlu0 %v1643
    %v1645 = vpop.xlane.xlu0 %1644
    %v1646 = vadd.f32 %v1538, %v1539
    %1647 = vadd.xlane.f32.xlu0 %v1646
    %v1648 = vpop.xlane.xlu0 %1647
    %v1649 = vadd.f32 %v1540, %v1541
    %1650 = vadd.xlane.f32.xlu0 %v1649
    %v1651 = vpop.xlane.xlu0 %1650
    %v1652 = vadd.f32 %v1542, %v1543
    %1653 = vadd.xlane.f32.xlu0 %v1652
    %v1654 = vpop.xlane.xlu0 %1653
    %v1655 = vadd.f32 %v1544, %v1545
    %1656 = vadd.xlane.f32.xlu0 %v1655
    %v1657 = vpop.xlane.xlu0 %1656
    %v1658 = vadd.f32 %v1546, %v1547
    %1659 = vadd.xlane.f32.xlu0 %v1658
    %v1660 = vpop.xlane.xlu0 %1659
    %v1661 = vadd.f32 %v1548, %v1549
    %1662 = vadd.xlane.f32.xlu0 %v1661
    %v1663 = vpop.xlane.xlu0 %1662
    %v1664 = vadd.f32 %v1550, %v1551
    %1665 = vadd.xlane.f32.xlu0 %v1664
    %v1666 = vpop.xlane.xlu0 %1665
    %v1667 = vadd.f32 %v1552, %v1553
    %1668 = vadd.xlane.f32.xlu0 %v1667
    %v1669 = vpop.xlane.xlu0 %1668
    %v1670 = vadd.f32 %v1554, %v1555
    %1671 = vadd.xlane.f32.xlu0 %v1670
    %v1672 = vpop.xlane.xlu0 %1671
    %v1673 = vadd.f32 %v1556, %v1557
    %1674 = vadd.xlane.f32.xlu0 %v1673
    %v1675 = vpop.xlane.xlu0 %1674
    %v1676 = vadd.f32 %v1558, %v1559
    %1677 = vadd.xlane.f32.xlu0 %v1676
    %v1678 = vpop.xlane.xlu0 %1677
    %v1679 = vadd.f32 %v1560, %v1561
    %1680 = vadd.xlane.f32.xlu0 %v1679
    %v1681 = vpop.xlane.xlu0 %1680
    %v1682 = vld [vmem:[%s6] sm:$0x1]
    %1684 = vset.pattern.permute.xlu0 0
    %1685 = vperm.xlu0 %1684, %v1682
    %v1686 = vpop.permute.xlu0 %1685
    %v1688 = vlaneseq
    %v1689 = vshrl.u32 %v1688, 7
    %v1690 = vsub.s32 0, %v1689
    %v1691 = vrot.slane %v1686, %v1690
    %v1692 = vadd.f32 %v1564, %v1691
    %v1693 = vadd.f32 %v1567, %v1691
    %v1694 = vadd.f32 %v1570, %v1691
    %v1695 = vadd.f32 %v1573, %v1691
    %v1696 = vadd.f32 %v1576, %v1691
    %v1697 = vadd.f32 %v1579, %v1691
    %v1698 = vadd.f32 %v1582, %v1691
    %v1699 = vadd.f32 %v1585, %v1691
    %v1700 = vadd.f32 %v1588, %v1691
    %v1701 = vadd.f32 %v1591, %v1691
    %v1702 = vadd.f32 %v1594, %v1691
    %v1703 = vadd.f32 %v1597, %v1691
    %v1704 = vadd.f32 %v1600, %v1691
    %v1705 = vadd.f32 %v1603, %v1691
    %v1706 = vadd.f32 %v1606, %v1691
    %v1707 = vadd.f32 %v1609, %v1691
    %v1708 = vadd.f32 %v1612, %v1691
    %v1709 = vadd.f32 %v1615, %v1691
    %v1710 = vadd.f32 %v1618, %v1691
    %v1711 = vadd.f32 %v1621, %v1691
    %v1712 = vadd.f32 %v1624, %v1691
    %v1713 = vadd.f32 %v1627, %v1691
    %v1714 = vadd.f32 %v1630, %v1691
    %v1715 = vadd.f32 %v1633, %v1691
    %v1716 = vadd.f32 %v1636, %v1691
    %v1717 = vadd.f32 %v1639, %v1691
    %v1718 = vadd.f32 %v1642, %v1691
    %v1719 = vadd.f32 %v1645, %v1691
    %v1720 = vadd.f32 %v1648, %v1691
    %v1721 = vadd.f32 %v1651, %v1691
    %v1722 = vadd.f32 %v1654, %v1691
    %v1723 = vadd.f32 %v1657, %v1691
    %v1724 = vadd.f32 %v1660, %v1691
    %v1725 = vadd.f32 %v1663, %v1691
    %v1726 = vadd.f32 %v1666, %v1691
    %v1727 = vadd.f32 %v1669, %v1691
    %v1728 = vadd.f32 %v1672, %v1691
    %v1729 = vadd.f32 %v1675, %v1691
    %v1730 = vadd.f32 %v1678, %v1691
    %v1731 = vadd.f32 %v1681, %v1691
    %s1732 = scalar_lea.vmem [#allocation2], 512
    %v1733 = vld [vmem:[%s1732] sm:$0xff]
    %v1734 = vld [vmem:[%s1732 + $0x8] sm:$0xff]
    %v1735 = vld [vmem:[%s1732 + $0x10] sm:$0xff]
    %v1736 = vld [vmem:[%s1732 + $0x18] sm:$0xff]
    %v1737 = vld [vmem:[%s1732 + $0x20] sm:$0xff]
    %v1738 = vld [vmem:[%s1732 + $0x28] sm:$0xff]
    %v1739 = vld [vmem:[%s1732 + $0x30] sm:$0xff]
    %v1740 = vld [vmem:[%s1732 + $0x38] sm:$0xff]
    %v1741 = vld [vmem:[%s1732 + $0x40] sm:$0xff]
    %v1742 = vld [vmem:[%s1732 + $0x48] sm:$0xff]
    %v1743 = vld [vmem:[%s1732 + $0x50] sm:$0xff]
    %v1744 = vld [vmem:[%s1732 + $0x58] sm:$0xff]
    %v1745 = vld [vmem:[%s1732 + $0x60] sm:$0xff]
    %v1746 = vld [vmem:[%s1732 + $0x68] sm:$0xff]
    %v1747 = vld [vmem:[%s1732 + $0x70] sm:$0xff]
    %v1748 = vld [vmem:[%s1732 + $0x78] sm:$0xff]
    %v1749 = vld [vmem:[%s1732 + $0x80] sm:$0xff]
    %v1750 = vld [vmem:[%s1732 + $0x88] sm:$0xff]
    %v1751 = vld [vmem:[%s1732 + $0x90] sm:$0xff]
    %v1752 = vld [vmem:[%s1732 + $0x98] sm:$0xff]
    %v1753 = vld [vmem:[%s1732 + $0xa0] sm:$0xff]
    %v1754 = vld [vmem:[%s1732 + $0xa8] sm:$0xff]
    %v1755 = vld [vmem:[%s1732 + $0xb0] sm:$0xff]
    %v1756 = vld [vmem:[%s1732 + $0xb8] sm:$0xff]
    %v1757 = vld [vmem:[%s1732 + $0xc0] sm:$0xff]
    %v1758 = vld [vmem:[%s1732 + $0xc8] sm:$0xff]
    %v1759 = vld [vmem:[%s1732 + $0xd0] sm:$0xff]
    %v1760 = vld [vmem:[%s1732 + $0xd8] sm:$0xff]
    %v1761 = vld [vmem:[%s1732 + $0xe0] sm:$0xff]
    %v1762 = vld [vmem:[%s1732 + $0xe8] sm:$0xff]
    %v1763 = vld [vmem:[%s1732 + $0xf0] sm:$0xff]
    %v1764 = vld [vmem:[%s1732 + $0xf8] sm:$0xff]
    %v1765 = vld [vmem:[%s1732 + $0x100] sm:$0xff]
    %v1766 = vld [vmem:[%s1732 + $0x108] sm:$0xff]
    %v1767 = vld [vmem:[%s1732 + $0x110] sm:$0xff]
    %v1768 = vld [vmem:[%s1732 + $0x118] sm:$0xff]
    %v1769 = vld [vmem:[%s1732 + $0x120] sm:$0xff]
    %v1770 = vld [vmem:[%s1732 + $0x128] sm:$0xff]
    %v1771 = vld [vmem:[%s1732 + $0x130] sm:$0xff]
    %v1772 = vld [vmem:[%s1732 + $0x138] sm:$0xff]
    %v1773 = vld [vmem:[%s1732 + $0x140] sm:$0xff]
    %v1774 = vld [vmem:[%s1732 + $0x148] sm:$0xff]
    %v1775 = vld [vmem:[%s1732 + $0x150] sm:$0xff]
    %v1776 = vld [vmem:[%s1732 + $0x158] sm:$0xff]
    %v1777 = vld [vmem:[%s1732 + $0x160] sm:$0xff]
    %v1778 = vld [vmem:[%s1732 + $0x168] sm:$0xff]
    %v1779 = vld [vmem:[%s1732 + $0x170] sm:$0xff]
    %v1780 = vld [vmem:[%s1732 + $0x178] sm:$0xff]
    %v1781 = vld [vmem:[%s1732 + $0x180] sm:$0xff]
    %v1782 = vld [vmem:[%s1732 + $0x188] sm:$0xff]
    %v1783 = vld [vmem:[%s1732 + $0x190] sm:$0xff]
    %v1784 = vld [vmem:[%s1732 + $0x198] sm:$0xff]
    %v1785 = vld [vmem:[%s1732 + $0x1a0] sm:$0xff]
    %v1786 = vld [vmem:[%s1732 + $0x1a8] sm:$0xff]
    %v1787 = vld [vmem:[%s1732 + $0x1b0] sm:$0xff]
    %v1788 = vld [vmem:[%s1732 + $0x1b8] sm:$0xff]
    %v1789 = vld [vmem:[%s1732 + $0x1c0] sm:$0xff]
    %v1790 = vld [vmem:[%s1732 + $0x1c8] sm:$0xff]
    %v1791 = vld [vmem:[%s1732 + $0x1d0] sm:$0xff]
    %v1792 = vld [vmem:[%s1732 + $0x1d8] sm:$0xff]
    %v1793 = vld [vmem:[%s1732 + $0x1e0] sm:$0xff]
    %v1794 = vld [vmem:[%s1732 + $0x1e8] sm:$0xff]
    %v1795 = vld [vmem:[%s1732 + $0x1f0] sm:$0xff]
    %v1796 = vld [vmem:[%s1732 + $0x1f8] sm:$0xff]
    %s1797 = scalar_lea.vmem %s4, 2
    %v1798 = vld [vmem:[%s1797] sm:$0x3]
    %v1800 = vlaneseq
    %v1801 = vshrl.u32 %v1800, 7
    %v1802 = vsub.s32 0, %v1801
    %v1803 = vrot.slane %v1798, %v1802
    %v1804 = vlaneseq
    %v1805 = vshrl.u32 %v1804, 7
    %v1806 = vsub.s32 1, %v1805
    %v1807 = vrot.slane %v1798, %v1806
    %1810 = vmatprep.subr.mxu0 %v1734
    %1811 = vmatpush1.msra.mxu0 %v1733
    %1812 = vmatprep.subr.mxu0 %v1736
    %1813 = vmatpush1.msra.mxu0 %v1735
    %1814 = vmatprep.subr.mxu0 %v1738
    %1815 = vmatpush1.msra.mxu0 %v1737
    %1816 = vmatprep.subr.mxu0 %v1740
    %1817 = vmatpush1.msra.mxu0 %v1739
    %1818 = vmatprep.subr.mxu0 %v1742
    %1819 = vmatpush1.msra.mxu0 %v1741
    %1820 = vmatprep.subr.mxu0 %v1744
    %1821 = vmatpush1.msra.mxu0 %v1743
    %1822 = vmatprep.subr.mxu0 %v1746
    %1823 = vmatpush1.msra.mxu0 %v1745
    %1824 = vmatprep.subr.mxu0 %v1748
    %1825 = vmatpush1.msra.mxu0 %v1747
    %1826 = vmatprep.subr.mxu0 %v1750
    %1827 = vmatpush1.msra.mxu0 %v1749
    %1828 = vmatprep.subr.mxu0 %v1752
    %1829 = vmatpush1.msra.mxu0 %v1751
    %1830 = vmatprep.subr.mxu0 %v1754
    %1831 = vmatpush1.msra.mxu0 %v1753
    %1832 = vmatprep.subr.mxu0 %v1756
    %1833 = vmatpush1.msra.mxu0 %v1755
    %1834 = vmatprep.subr.mxu0 %v1758
    %1835 = vmatpush1.msra.mxu0 %v1757
    %1836 = vmatprep.subr.mxu0 %v1760
    %1837 = vmatpush1.msra.mxu0 %v1759
    %1838 = vmatprep.subr.mxu0 %v1762
    %1839 = vmatpush1.msra.mxu0 %v1761
    %1840 = vmatprep.subr.mxu0 %v1764
    %1841 = vmatpush1.msra.mxu0 %v1763
    %1842 = vmatprep.subr.mxu0 %v1766
    %1843 = vmatpush1.msra.mxu0 %v1765
    %1844 = vmatprep.subr.mxu0 %v1768
    %1845 = vmatpush1.msra.mxu0 %v1767
    %1846 = vmatprep.subr.mxu0 %v1770
    %1847 = vmatpush1.msra.mxu0 %v1769
    %1848 = vmatprep.subr.mxu0 %v1772
    %1849 = vmatpush1.msra.mxu0 %v1771
    %1850 = vmatprep.subr.mxu0 %v1774
    %1851 = vmatpush1.msra.mxu0 %v1773
    %1852 = vmatprep.subr.mxu0 %v1776
    %1853 = vmatpush1.msra.mxu0 %v1775
    %1854 = vmatprep.subr.mxu0 %v1778
    %1855 = vmatpush1.msra.mxu0 %v1777
    %1856 = vmatprep.subr.mxu0 %v1780
    %1857 = vmatpush1.msra.mxu0 %v1779
    %1858 = vmatprep.subr.mxu0 %v1782
    %1859 = vmatpush1.msra.mxu0 %v1781
    %1860 = vmatprep.subr.mxu0 %v1784
    %1861 = vmatpush1.msra.mxu0 %v1783
    %1862 = vmatprep.subr.mxu0 %v1786
    %1863 = vmatpush1.msra.mxu0 %v1785
    %1864 = vmatprep.subr.mxu0 %v1788
    %1865 = vmatpush1.msra.mxu0 %v1787
    %1866 = vmatprep.subr.mxu0 %v1790
    %1867 = vmatpush1.msra.mxu0 %v1789
    %1868 = vmatprep.subr.mxu0 %v1792
    %1869 = vmatpush1.msra.mxu0 %v1791
    %1870 = vmatprep.subr.mxu0 %v1794
    %1871 = vmatpush1.msra.mxu0 %v1793
    %1872 = vmatprep.subr.mxu0 %v1796
    %1873 = vmatpush1.msra.mxu0 %v1795
    %1874 = vmatprep.mubr.f32.mxu0 %v852
    %1875 = vmatmul.mubr.f32.gmra.mrb[0].mxu0 %v851
    %v1876 = vpop.f32.mrb[0].mxu0
    %v1877 = vadd.f32 %v1803, %v1876
    %v1878 = vpop.f32.mrb[0].mxu0
    %v1879 = vadd.f32 %v1807, %v1878
    %1880 = vmatprep.mubr.f32.mxu0 %v856
    %1881 = vmatmul.mubr.f32.gmra.mrb[0].mxu0 %v855
    %v1882 = vpop.f32.mrb[0].mxu0
    %v1883 = vadd.f32 %v1803, %v1882
    %v1884 = vpop.f32.mrb[0].mxu0
    %v1885 = vadd.f32 %v1807, %v1884
    %1886 = vmatprep.mubr.f32.mxu0 %v860
    %1887 = vmatmul.mubr.f32.gmra.mrb[0].mxu0 %v859
    %v1888 = vpop.f32.mrb[0].mxu0
    %v1889 = vadd.f32 %v1803, %v1888
    %v1890 = vpop.f32.mrb[0].mxu0
    %v1891 = vadd.f32 %v1807, %v1890
    %1892 = vmatprep.mubr.f32.mxu0 %v864
    %1893 = vmatmul.mubr.f32.gmra.mrb[0].mxu0 %v863
    %v1894 = vpop.f32.mrb[0].mxu0
    %v1895 = vadd.f32 %v1803, %v1894
    %v1896 = vpop.f32.mrb[0].mxu0
    %v1897 = vadd.f32 %v1807, %v1896
    %1898 = vmatprep.mubr.f32.mxu0 %v868
    %1899 = vmatmul.mubr.f32.gmra.mrb[0].mxu0 %v867
    %v1900 = vpop.f32.mrb[0].mxu0
    %v1901 = vadd.f32 %v1803, %v1900
    %v1902 = vpop.f32.mrb[0].mxu0
    %v1903 = vadd.f32 %v1807, %v1902
    %1904 = vmatprep.mubr.f32.mxu0 %v872
    %1905 = vmatmul.mubr.f32.gmra.mrb[0].mxu0 %v871
    %v1906 = vpop.f32.mrb[0].mxu0
    %v1907 = vadd.f32 %v1803, %v1906
    %v1908 = vpop.f32.mrb[0].mxu0
    %v1909 = vadd.f32 %v1807, %v1908
    %1910 = vmatprep.mubr.f32.mxu0 %v876
    %1911 = vmatmul.mubr.f32.gmra.mrb[0].mxu0 %v875
    %v1912 = vpop.f32.mrb[0].mxu0
    %v1913 = vadd.f32 %v1803, %v1912
    %v1914 = vpop.f32.mrb[0].mxu0
    %v1915 = vadd.f32 %v1807, %v1914
    %1916 = vmatprep.mubr.f32.mxu0 %v880
    %1917 = vmatmul.mubr.f32.gmra.mrb[0].mxu0 %v879
    %v1918 = vpop.f32.mrb[0].mxu0
    %v1919 = vadd.f32 %v1803, %v1918
    %v1920 = vpop.f32.mrb[0].mxu0
    %v1921 = vadd.f32 %v1807, %v1920
    %1922 = vmatprep.mubr.f32.mxu0 %v884
    %1923 = vmatmul.mubr.f32.gmra.mrb[0].mxu0 %v883
    %v1924 = vpop.f32.mrb[0].mxu0
    %v1925 = vadd.f32 %v1803, %v1924
    %v1926 = vpop.f32.mrb[0].mxu0
    %v1927 = vadd.f32 %v1807, %v1926
    %1928 = vmatprep.mubr.f32.mxu0 %v888
    %1929 = vmatmul.mubr.f32.gmra.mrb[0].mxu0 %v887
    %v1930 = vpop.f32.mrb[0].mxu0
    %v1931 = vadd.f32 %v1803, %v1930
    %v1932 = vpop.f32.mrb[0].mxu0
    %v1933 = vadd.f32 %v1807, %v1932
    %1934 = vmatprep.mubr.f32.mxu0 %v892
    %1935 = vmatmul.mubr.f32.gmra.mrb[0].mxu0 %v891
    %v1936 = vpop.f32.mrb[0].mxu0
    %v1937 = vadd.f32 %v1803, %v1936
    %v1938 = vpop.f32.mrb[0].mxu0
    %v1939 = vadd.f32 %v1807, %v1938
    %1940 = vmatprep.mubr.f32.mxu0 %v896
    %1941 = vmatmul.mubr.f32.gmra.mrb[0].mxu0 %v895
    %v1942 = vpop.f32.mrb[0].mxu0
    %v1943 = vadd.f32 %v1803, %v1942
    %v1944 = vpop.f32.mrb[0].mxu0
    %v1945 = vadd.f32 %v1807, %v1944
    %1946 = vmatprep.mubr.f32.mxu0 %v900
    %1947 = vmatmul.mubr.f32.gmra.mrb[0].mxu0 %v899
    %v1948 = vpop.f32.mrb[0].mxu0
    %v1949 = vadd.f32 %v1803, %v1948
    %v1950 = vpop.f32.mrb[0].mxu0
    %v1951 = vadd.f32 %v1807, %v1950
    %1952 = vmatprep.mubr.f32.mxu0 %v904
    %1953 = vmatmul.mubr.f32.gmra.mrb[0].mxu0 %v903
    %v1954 = vpop.f32.mrb[0].mxu0
    %v1955 = vadd.f32 %v1803, %v1954
    %v1956 = vpop.f32.mrb[0].mxu0
    %v1957 = vadd.f32 %v1807, %v1956
    %1958 = vmatprep.mubr.f32.mxu0 %v908
    %1959 = vmatmul.mubr.f32.gmra.mrb[0].mxu0 %v907
    %v1960 = vpop.f32.mrb[0].mxu0
    %v1961 = vadd.f32 %v1803, %v1960
    %v1962 = vpop.f32.mrb[0].mxu0
    %v1963 = vadd.f32 %v1807, %v1962
    %1964 = vmatprep.mubr.f32.mxu0 %v912
    %1965 = vmatmul.mubr.f32.gmra.mrb[0].mxu0 %v911
    %v1966 = vpop.f32.mrb[0].mxu0
    %v1967 = vadd.f32 %v1803, %v1966
    %v1968 = vpop.f32.mrb[0].mxu0
    %v1969 = vadd.f32 %v1807, %v1968
    %1970 = vmatprep.mubr.f32.mxu0 %v916
    %1971 = vmatmul.mubr.f32.gmra.mrb[0].mxu0 %v915
    %v1972 = vpop.f32.mrb[0].mxu0
    %v1973 = vadd.f32 %v1803, %v1972
    %v1974 = vpop.f32.mrb[0].mxu0
    %v1975 = vadd.f32 %v1807, %v1974
    %1976 = vmatprep.mubr.f32.mxu0 %v920
    %1977 = vmatmul.mubr.f32.gmra.mrb[0].mxu0 %v919
    %v1978 = vpop.f32.mrb[0].mxu0
    %v1979 = vadd.f32 %v1803, %v1978
    %v1980 = vpop.f32.mrb[0].mxu0
    %v1981 = vadd.f32 %v1807, %v1980
    %1982 = vmatprep.mubr.f32.mxu0 %v924
    %1983 = vmatmul.mubr.f32.gmra.mrb[0].mxu0 %v923
    %v1984 = vpop.f32.mrb[0].mxu0
    %v1985 = vadd.f32 %v1803, %v1984
    %v1986 = vpop.f32.mrb[0].mxu0
    %v1987 = vadd.f32 %v1807, %v1986
    %1988 = vmatprep.mubr.f32.mxu0 %v928
    %1989 = vmatmul.mubr.f32.gmra.mrb[0].mxu0 %v927
    %v1990 = vpop.f32.mrb[0].mxu0
    %v1991 = vadd.f32 %v1803, %v1990
    %v1992 = vpop.f32.mrb[0].mxu0
    %v1993 = vadd.f32 %v1807, %v1992
    %1994 = vmatprep.mubr.f32.mxu0 %v932
    %1995 = vmatmul.mubr.f32.gmra.mrb[0].mxu0 %v931
    %v1996 = vpop.f32.mrb[0].mxu0
    %v1997 = vadd.f32 %v1803, %v1996
    %v1998 = vpop.f32.mrb[0].mxu0
    %v1999 = vadd.f32 %v1807, %v1998
    %2000 = vmatprep.mubr.f32.mxu0 %v936
    %2001 = vmatmul.mubr.f32.gmra.mrb[0].mxu0 %v935
    %v2002 = vpop.f32.mrb[0].mxu0
    %v2003 = vadd.f32 %v1803, %v2002
    %v2004 = vpop.f32.mrb[0].mxu0
    %v2005 = vadd.f32 %v1807, %v2004
    %2006 = vmatprep.mubr.f32.mxu0 %v940
    %2007 = vmatmul.mubr.f32.gmra.mrb[0].mxu0 %v939
    %v2008 = vpop.f32.mrb[0].mxu0
    %v2009 = vadd.f32 %v1803, %v2008
    %v2010 = vpop.f32.mrb[0].mxu0
    %v2011 = vadd.f32 %v1807, %v2010
    %2012 = vmatprep.mubr.f32.mxu0 %v944
    %2013 = vmatmul.mubr.f32.gmra.mrb[0].mxu0 %v943
    %v2014 = vpop.f32.mrb[0].mxu0
    %v2015 = vadd.f32 %v1803, %v2014
    %v2016 = vpop.f32.mrb[0].mxu0
    %v2017 = vadd.f32 %v1807, %v2016
    %2018 = vmatprep.mubr.f32.mxu0 %v948
    %2019 = vmatmul.mubr.f32.gmra.mrb[0].mxu0 %v947
    %v2020 = vpop.f32.mrb[0].mxu0
    %v2021 = vadd.f32 %v1803, %v2020
    %v2022 = vpop.f32.mrb[0].mxu0
    %v2023 = vadd.f32 %v1807, %v2022
    %2024 = vmatprep.mubr.f32.mxu0 %v952
    %2025 = vmatmul.mubr.f32.gmra.mrb[0].mxu0 %v951
    %v2026 = vpop.f32.mrb[0].mxu0
    %v2027 = vadd.f32 %v1803, %v2026
    %v2028 = vpop.f32.mrb[0].mxu0
    %v2029 = vadd.f32 %v1807, %v2028
    %2030 = vmatprep.mubr.f32.mxu0 %v956
    %2031 = vmatmul.mubr.f32.gmra.mrb[0].mxu0 %v955
    %v2032 = vpop.f32.mrb[0].mxu0
    %v2033 = vadd.f32 %v1803, %v2032
    %v2034 = vpop.f32.mrb[0].mxu0
    %v2035 = vadd.f32 %v1807, %v2034
    %2036 = vmatprep.mubr.f32.mxu0 %v960
    %2037 = vmatmul.mubr.f32.gmra.mrb[0].mxu0 %v959
    %v2038 = vpop.f32.mrb[0].mxu0
    %v2039 = vadd.f32 %v1803, %v2038
    %v2040 = vpop.f32.mrb[0].mxu0
    %v2041 = vadd.f32 %v1807, %v2040
    %2042 = vmatprep.mubr.f32.mxu0 %v964
    %2043 = vmatmul.mubr.f32.gmra.mrb[0].mxu0 %v963
    %v2044 = vpop.f32.mrb[0].mxu0
    %v2045 = vadd.f32 %v1803, %v2044
    %v2046 = vpop.f32.mrb[0].mxu0
    %v2047 = vadd.f32 %v1807, %v2046
    %2048 = vmatprep.mubr.f32.mxu0 %v968
    %2049 = vmatmul.mubr.f32.gmra.mrb[0].mxu0 %v967
    %v2050 = vpop.f32.mrb[0].mxu0
    %v2051 = vadd.f32 %v1803, %v2050
    %v2052 = vpop.f32.mrb[0].mxu0
    %v2053 = vadd.f32 %v1807, %v2052
    %2054 = vmatprep.mubr.f32.mxu0 %v972
    %2055 = vmatmul.mubr.f32.gmra.mrb[0].mxu0 %v971
    %v2056 = vpop.f32.mrb[0].mxu0
    %v2057 = vadd.f32 %v1803, %v2056
    %v2058 = vpop.f32.mrb[0].mxu0
    %v2059 = vadd.f32 %v1807, %v2058
    %2060 = vmatprep.mubr.f32.mxu0 %v976
    %2061 = vmatmul.mubr.f32.gmra.mrb[0].mxu0 %v975
    %v2062 = vpop.f32.mrb[0].mxu0
    %v2063 = vadd.f32 %v1803, %v2062
    %v2064 = vpop.f32.mrb[0].mxu0
    %v2065 = vadd.f32 %v1807, %v2064
    %2066 = vmatprep.mubr.f32.mxu0 %v980
    %2067 = vmatmul.mubr.f32.gmra.mrb[0].mxu0 %v979
    %v2068 = vpop.f32.mrb[0].mxu0
    %v2069 = vadd.f32 %v1803, %v2068
    %v2070 = vpop.f32.mrb[0].mxu0
    %v2071 = vadd.f32 %v1807, %v2070
    %2072 = vmatprep.mubr.f32.mxu0 %v984
    %2073 = vmatmul.mubr.f32.gmra.mrb[0].mxu0 %v983
    %v2074 = vpop.f32.mrb[0].mxu0
    %v2075 = vadd.f32 %v1803, %v2074
    %v2076 = vpop.f32.mrb[0].mxu0
    %v2077 = vadd.f32 %v1807, %v2076
    %2078 = vmatprep.mubr.f32.mxu0 %v988
    %2079 = vmatmul.mubr.f32.gmra.mrb[0].mxu0 %v987
    %v2080 = vpop.f32.mrb[0].mxu0
    %v2081 = vadd.f32 %v1803, %v2080
    %v2082 = vpop.f32.mrb[0].mxu0
    %v2083 = vadd.f32 %v1807, %v2082
    %2084 = vmatprep.mubr.f32.mxu0 %v992
    %2085 = vmatmul.mubr.f32.gmra.mrb[0].mxu0 %v991
    %v2086 = vpop.f32.mrb[0].mxu0
    %v2087 = vadd.f32 %v1803, %v2086
    %v2088 = vpop.f32.mrb[0].mxu0
    %v2089 = vadd.f32 %v1807, %v2088
    %2090 = vmatprep.mubr.f32.mxu0 %v996
    %2091 = vmatmul.mubr.f32.gmra.mrb[0].mxu0 %v995
    %v2092 = vpop.f32.mrb[0].mxu0
    %v2093 = vadd.f32 %v1803, %v2092
    %v2094 = vpop.f32.mrb[0].mxu0
    %v2095 = vadd.f32 %v1807, %v2094
    %2096 = vmatprep.mubr.f32.mxu0 %v1000
    %2097 = vmatmul.mubr.f32.gmra.mrb[0].mxu0 %v999
    %v2098 = vpop.f32.mrb[0].mxu0
    %v2099 = vadd.f32 %v1803, %v2098
    %v2100 = vpop.f32.mrb[0].mxu0
    %v2101 = vadd.f32 %v1807, %v2100
    %2102 = vmatprep.mubr.f32.mxu0 %v1004
    %2103 = vmatmul.mubr.f32.gmra.mrb[0].mxu0 %v1003
    %v2104 = vpop.f32.mrb[0].mxu0
    %v2105 = vadd.f32 %v1803, %v2104
    %v2106 = vpop.f32.mrb[0].mxu0
    %v2107 = vadd.f32 %v1807, %v2106
    %2108 = vmatprep.mubr.f32.mxu0 %v1008
    %2109 = vmatmul.mubr.f32.gmra.mrb[0].mxu0 %v1007
    %v2110 = vpop.f32.mrb[0].mxu0
    %v2111 = vadd.f32 %v1803, %v2110
    %v2112 = vpop.f32.mrb[0].mxu0
    %v2113 = vadd.f32 %v1807, %v2112
    %2114 = vdwg.mxu0
    %v2115 = vmax.f32 %v1877, 0.0
    %v2116 = vmax.f32 %v1879, 0.0
    %v2117 = vmax.f32 %v1883, 0.0
    %v2118 = vmax.f32 %v1885, 0.0
    %v2119 = vmax.f32 %v1889, 0.0
    %v2120 = vmax.f32 %v1891, 0.0
    %v2121 = vmax.f32 %v1895, 0.0
    %v2122 = vmax.f32 %v1897, 0.0
    %v2123 = vmax.f32 %v1901, 0.0
    %v2124 = vmax.f32 %v1903, 0.0
    %v2125 = vmax.f32 %v1907, 0.0
    %v2126 = vmax.f32 %v1909, 0.0
    %v2127 = vmax.f32 %v1913, 0.0
    %v2128 = vmax.f32 %v1915, 0.0
    %v2129 = vmax.f32 %v1919, 0.0
    %v2130 = vmax.f32 %v1921, 0.0
    %v2131 = vmax.f32 %v1925, 0.0
    %v2132 = vmax.f32 %v1927, 0.0
    %v2133 = vmax.f32 %v1931, 0.0
    %v2134 = vmax.f32 %v1933, 0.0
    %v2135 = vmax.f32 %v1937, 0.0
    %v2136 = vmax.f32 %v1939, 0.0
    %v2137 = vmax.f32 %v1943, 0.0
    %v2138 = vmax.f32 %v1945, 0.0
    %v2139 = vmax.f32 %v1949, 0.0
    %v2140 = vmax.f32 %v1951, 0.0
    %v2141 = vmax.f32 %v1955, 0.0
    %v2142 = vmax.f32 %v1957, 0.0
    %v2143 = vmax.f32 %v1961, 0.0
    %v2144 = vmax.f32 %v1963, 0.0
    %v2145 = vmax.f32 %v1967, 0.0
    %v2146 = vmax.f32 %v1969, 0.0
    %v2147 = vmax.f32 %v1973, 0.0
    %v2148 = vmax.f32 %v1975, 0.0
    %v2149 = vmax.f32 %v1979, 0.0
    %v2150 = vmax.f32 %v1981, 0.0
    %v2151 = vmax.f32 %v1985, 0.0
    %v2152 = vmax.f32 %v1987, 0.0
    %v2153 = vmax.f32 %v1991, 0.0
    %v2154 = vmax.f32 %v1993, 0.0
    %v2155 = vmax.f32 %v1997, 0.0
    %v2156 = vmax.f32 %v1999, 0.0
    %v2157 = vmax.f32 %v2003, 0.0
    %v2158 = vmax.f32 %v2005, 0.0
    %v2159 = vmax.f32 %v2009, 0.0
    %v2160 = vmax.f32 %v2011, 0.0
    %v2161 = vmax.f32 %v2015, 0.0
    %v2162 = vmax.f32 %v2017, 0.0
    %v2163 = vmax.f32 %v2021, 0.0
    %v2164 = vmax.f32 %v2023, 0.0
    %v2165 = vmax.f32 %v2027, 0.0
    %v2166 = vmax.f32 %v2029, 0.0
    %v2167 = vmax.f32 %v2033, 0.0
    %v2168 = vmax.f32 %v2035, 0.0
    %v2169 = vmax.f32 %v2039, 0.0
    %v2170 = vmax.f32 %v2041, 0.0
    %v2171 = vmax.f32 %v2045, 0.0
    %v2172 = vmax.f32 %v2047, 0.0
    %v2173 = vmax.f32 %v2051, 0.0
    %v2174 = vmax.f32 %v2053, 0.0
    %v2175 = vmax.f32 %v2057, 0.0
    %v2176 = vmax.f32 %v2059, 0.0
    %v2177 = vmax.f32 %v2063, 0.0
    %v2178 = vmax.f32 %v2065, 0.0
    %v2179 = vmax.f32 %v2069, 0.0
    %v2180 = vmax.f32 %v2071, 0.0
    %v2181 = vmax.f32 %v2075, 0.0
    %v2182 = vmax.f32 %v2077, 0.0
    %v2183 = vmax.f32 %v2081, 0.0
    %v2184 = vmax.f32 %v2083, 0.0
    %v2185 = vmax.f32 %v2087, 0.0
    %v2186 = vmax.f32 %v2089, 0.0
    %v2187 = vmax.f32 %v2093, 0.0
    %v2188 = vmax.f32 %v2095, 0.0
    %v2189 = vmax.f32 %v2099, 0.0
    %v2190 = vmax.f32 %v2101, 0.0
    %v2191 = vmax.f32 %v2105, 0.0
    %v2192 = vmax.f32 %v2107, 0.0
    %v2193 = vmax.f32 %v2111, 0.0
    %v2194 = vmax.f32 %v2113, 0.0
    %s2195 = scalar_lea.vmem %s5, 2
    %v2196 = vld [vmem:[%s2195] sm:$0x3]
    %v2198 = vlaneseq
    %v2199 = vshrl.u32 %v2198, 7
    %v2200 = vsub.s32 0, %v2199
    %v2201 = vrot.slane %v2196, %v2200
    %v2202 = vlaneseq
    %v2203 = vshrl.u32 %v2202, 7
    %v2204 = vsub.s32 1, %v2203
    %v2205 = vrot.slane %v2196, %v2204
    %v2208 = vmul.f32 %v2115, %v2201
    %v2209 = vmul.f32 %v2116, %v2205
    %v2210 = vmul.f32 %v2117, %v2201
    %v2211 = vmul.f32 %v2118, %v2205
    %v2212 = vmul.f32 %v2119, %v2201
    %v2213 = vmul.f32 %v2120, %v2205
    %v2214 = vmul.f32 %v2121, %v2201
    %v2215 = vmul.f32 %v2122, %v2205
    %v2216 = vmul.f32 %v2123, %v2201
    %v2217 = vmul.f32 %v2124, %v2205
    %v2218 = vmul.f32 %v2125, %v2201
    %v2219 = vmul.f32 %v2126, %v2205
    %v2220 = vmul.f32 %v2127, %v2201
    %v2221 = vmul.f32 %v2128, %v2205
    %v2222 = vmul.f32 %v2129, %v2201
    %v2223 = vmul.f32 %v2130, %v2205
    %v2224 = vmul.f32 %v2131, %v2201
    %v2225 = vmul.f32 %v2132, %v2205
    %v2226 = vmul.f32 %v2133, %v2201
    %v2227 = vmul.f32 %v2134, %v2205
    %v2228 = vmul.f32 %v2135, %v2201
    %v2229 = vmul.f32 %v2136, %v2205
    %v2230 = vmul.f32 %v2137, %v2201
    %v2231 = vmul.f32 %v2138, %v2205
    %v2232 = vmul.f32 %v2139, %v2201
    %v2233 = vmul.f32 %v2140, %v2205
    %v2234 = vmul.f32 %v2141, %v2201
    %v2235 = vmul.f32 %v2142, %v2205
    %v2236 = vmul.f32 %v2143, %v2201
    %v2237 = vmul.f32 %v2144, %v2205
    %v2238 = vmul.f32 %v2145, %v2201
    %v2239 = vmul.f32 %v2146, %v2205
    %v2240 = vmul.f32 %v2147, %v2201
    %v2241 = vmul.f32 %v2148, %v2205
    %v2242 = vmul.f32 %v2149, %v2201
    %v2243 = vmul.f32 %v2150, %v2205
    %v2244 = vmul.f32 %v2151, %v2201
    %v2245 = vmul.f32 %v2152, %v2205
    %v2246 = vmul.f32 %v2153, %v2201
    %v2247 = vmul.f32 %v2154, %v2205
    %v2248 = vmul.f32 %v2155, %v2201
    %v2249 = vmul.f32 %v2156, %v2205
    %v2250 = vmul.f32 %v2157, %v2201
    %v2251 = vmul.f32 %v2158, %v2205
    %v2252 = vmul.f32 %v2159, %v2201
    %v2253 = vmul.f32 %v2160, %v2205
    %v2254 = vmul.f32 %v2161, %v2201
    %v2255 = vmul.f32 %v2162, %v2205
    %v2256 = vmul.f32 %v2163, %v2201
    %v2257 = vmul.f32 %v2164, %v2205
    %v2258 = vmul.f32 %v2165, %v2201
    %v2259 = vmul.f32 %v2166, %v2205
    %v2260 = vmul.f32 %v2167, %v2201
    %v2261 = vmul.f32 %v2168, %v2205
    %v2262 = vmul.f32 %v2169, %v2201
    %v2263 = vmul.f32 %v2170, %v2205
    %v2264 = vmul.f32 %v2171, %v2201
    %v2265 = vmul.f32 %v2172, %v2205
    %v2266 = vmul.f32 %v2173, %v2201
    %v2267 = vmul.f32 %v2174, %v2205
    %v2268 = vmul.f32 %v2175, %v2201
    %v2269 = vmul.f32 %v2176, %v2205
    %v2270 = vmul.f32 %v2177, %v2201
    %v2271 = vmul.f32 %v2178, %v2205
    %v2272 = vmul.f32 %v2179, %v2201
    %v2273 = vmul.f32 %v2180, %v2205
    %v2274 = vmul.f32 %v2181, %v2201
    %v2275 = vmul.f32 %v2182, %v2205
    %v2276 = vmul.f32 %v2183, %v2201
    %v2277 = vmul.f32 %v2184, %v2205
    %v2278 = vmul.f32 %v2185, %v2201
    %v2279 = vmul.f32 %v2186, %v2205
    %v2280 = vmul.f32 %v2187, %v2201
    %v2281 = vmul.f32 %v2188, %v2205
    %v2282 = vmul.f32 %v2189, %v2201
    %v2283 = vmul.f32 %v2190, %v2205
    %v2284 = vmul.f32 %v2191, %v2201
    %v2285 = vmul.f32 %v2192, %v2205
    %v2286 = vmul.f32 %v2193, %v2201
    %v2287 = vmul.f32 %v2194, %v2205
    %v2288 = vadd.f32 %v2208, %v2209
    %2289 = vadd.xlane.f32.xlu0 %v2288
    %v2290 = vpop.xlane.xlu0 %2289
    %v2291 = vadd.f32 %v2210, %v2211
    %2292 = vadd.xlane.f32.xlu0 %v2291
    %v2293 = vpop.xlane.xlu0 %2292
    %v2294 = vadd.f32 %v2212, %v2213
    %2295 = vadd.xlane.f32.xlu0 %v2294
    %v2296 = vpop.xlane.xlu0 %2295
    %v2297 = vadd.f32 %v2214, %v2215
    %2298 = vadd.xlane.f32.xlu0 %v2297
    %v2299 = vpop.xlane.xlu0 %2298
    %v2300 = vadd.f32 %v2216, %v2217
    %2301 = vadd.xlane.f32.xlu0 %v2300
    %v2302 = vpop.xlane.xlu0 %2301
    %v2303 = vadd.f32 %v2218, %v2219
    %2304 = vadd.xlane.f32.xlu0 %v2303
    %v2305 = vpop.xlane.xlu0 %2304
    %v2306 = vadd.f32 %v2220, %v2221
    %2307 = vadd.xlane.f32.xlu0 %v2306
    %v2308 = vpop.xlane.xlu0 %2307
    %v2309 = vadd.f32 %v2222, %v2223
    %2310 = vadd.xlane.f32.xlu0 %v2309
    %v2311 = vpop.xlane.xlu0 %2310
    %v2312 = vadd.f32 %v2224, %v2225
    %2313 = vadd.xlane.f32.xlu0 %v2312
    %v2314 = vpop.xlane.xlu0 %2313
    %v2315 = vadd.f32 %v2226, %v2227
    %2316 = vadd.xlane.f32.xlu0 %v2315
    %v2317 = vpop.xlane.xlu0 %2316
    %v2318 = vadd.f32 %v2228, %v2229
    %2319 = vadd.xlane.f32.xlu0 %v2318
    %v2320 = vpop.xlane.xlu0 %2319
    %v2321 = vadd.f32 %v2230, %v2231
    %2322 = vadd.xlane.f32.xlu0 %v2321
    %v2323 = vpop.xlane.xlu0 %2322
    %v2324 = vadd.f32 %v2232, %v2233
    %2325 = vadd.xlane.f32.xlu0 %v2324
    %v2326 = vpop.xlane.xlu0 %2325
    %v2327 = vadd.f32 %v2234, %v2235
    %2328 = vadd.xlane.f32.xlu0 %v2327
    %v2329 = vpop.xlane.xlu0 %2328
    %v2330 = vadd.f32 %v2236, %v2237
    %2331 = vadd.xlane.f32.xlu0 %v2330
    %v2332 = vpop.xlane.xlu0 %2331
    %v2333 = vadd.f32 %v2238, %v2239
    %2334 = vadd.xlane.f32.xlu0 %v2333
    %v2335 = vpop.xlane.xlu0 %2334
    %v2336 = vadd.f32 %v2240, %v2241
    %2337 = vadd.xlane.f32.xlu0 %v2336
    %v2338 = vpop.xlane.xlu0 %2337
    %v2339 = vadd.f32 %v2242, %v2243
    %2340 = vadd.xlane.f32.xlu0 %v2339
    %v2341 = vpop.xlane.xlu0 %2340
    %v2342 = vadd.f32 %v2244, %v2245
    %2343 = vadd.xlane.f32.xlu0 %v2342
    %v2344 = vpop.xlane.xlu0 %2343
    %v2345 = vadd.f32 %v2246, %v2247
    %2346 = vadd.xlane.f32.xlu0 %v2345
    %v2347 = vpop.xlane.xlu0 %2346
    %v2348 = vadd.f32 %v2248, %v2249
    %2349 = vadd.xlane.f32.xlu0 %v2348
    %v2350 = vpop.xlane.xlu0 %2349
    %v2351 = vadd.f32 %v2250, %v2251
    %2352 = vadd.xlane.f32.xlu0 %v2351
    %v2353 = vpop.xlane.xlu0 %2352
    %v2354 = vadd.f32 %v2252, %v2253
    %2355 = vadd.xlane.f32.xlu0 %v2354
    %v2356 = vpop.xlane.xlu0 %2355
    %v2357 = vadd.f32 %v2254, %v2255
    %2358 = vadd.xlane.f32.xlu0 %v2357
    %v2359 = vpop.xlane.xlu0 %2358
    %v2360 = vadd.f32 %v2256, %v2257
    %2361 = vadd.xlane.f32.xlu0 %v2360
    %v2362 = vpop.xlane.xlu0 %2361
    %v2363 = vadd.f32 %v2258, %v2259
    %2364 = vadd.xlane.f32.xlu0 %v2363
    %v2365 = vpop.xlane.xlu0 %2364
    %v2366 = vadd.f32 %v2260, %v2261
    %2367 = vadd.xlane.f32.xlu0 %v2366
    %v2368 = vpop.xlane.xlu0 %2367
    %v2369 = vadd.f32 %v2262, %v2263
    %2370 = vadd.xlane.f32.xlu0 %v2369
    %v2371 = vpop.xlane.xlu0 %2370
    %v2372 = vadd.f32 %v2264, %v2265
    %2373 = vadd.xlane.f32.xlu0 %v2372
    %v2374 = vpop.xlane.xlu0 %2373
    %v2375 = vadd.f32 %v2266, %v2267
    %2376 = vadd.xlane.f32.xlu0 %v2375
    %v2377 = vpop.xlane.xlu0 %2376
    %v2378 = vadd.f32 %v2268, %v2269
    %2379 = vadd.xlane.f32.xlu0 %v2378
    %v2380 = vpop.xlane.xlu0 %2379
    %v2381 = vadd.f32 %v2270, %v2271
    %2382 = vadd.xlane.f32.xlu0 %v2381
    %v2383 = vpop.xlane.xlu0 %2382
    %v2384 = vadd.f32 %v2272, %v2273
    %2385 = vadd.xlane.f32.xlu0 %v2384
    %v2386 = vpop.xlane.xlu0 %2385
    %v2387 = vadd.f32 %v2274, %v2275
    %2388 = vadd.xlane.f32.xlu0 %v2387
    %v2389 = vpop.xlane.xlu0 %2388
    %v2390 = vadd.f32 %v2276, %v2277
    %2391 = vadd.xlane.f32.xlu0 %v2390
    %v2392 = vpop.xlane.xlu0 %2391
    %v2393 = vadd.f32 %v2278, %v2279
    %2394 = vadd.xlane.f32.xlu0 %v2393
    %v2395 = vpop.xlane.xlu0 %2394
    %v2396 = vadd.f32 %v2280, %v2281
    %2397 = vadd.xlane.f32.xlu0 %v2396
    %v2398 = vpop.xlane.xlu0 %2397
    %v2399 = vadd.f32 %v2282, %v2283
    %2400 = vadd.xlane.f32.xlu0 %v2399
    %v2401 = vpop.xlane.xlu0 %2400
    %v2402 = vadd.f32 %v2284, %v2285
    %2403 = vadd.xlane.f32.xlu0 %v2402
    %v2404 = vpop.xlane.xlu0 %2403
    %v2405 = vadd.f32 %v2286, %v2287
    %2406 = vadd.xlane.f32.xlu0 %v2405
    %v2407 = vpop.xlane.xlu0 %2406
    %s2408 = scalar_lea.vmem %s6, 1
    %v2409 = vld [vmem:[%s2408] sm:$0x1]
    %2411 = vset.pattern.permute.xlu0 0
    %2412 = vperm.xlu0 %2411, %v2409
    %v2413 = vpop.permute.xlu0 %2412
    %v2415 = vlaneseq
    %v2416 = vshrl.u32 %v2415, 7
    %v2417 = vsub.s32 0, %v2416
    %v2418 = vrot.slane %v2413, %v2417
    %v2419 = vadd.f32 %v2290, %v2418
    %v2420 = vadd.f32 %v2293, %v2418
    %v2421 = vadd.f32 %v2296, %v2418
    %v2422 = vadd.f32 %v2299, %v2418
    %v2423 = vadd.f32 %v2302, %v2418
    %v2424 = vadd.f32 %v2305, %v2418
    %v2425 = vadd.f32 %v2308, %v2418
    %v2426 = vadd.f32 %v2311, %v2418
    %v2427 = vadd.f32 %v2314, %v2418
    %v2428 = vadd.f32 %v2317, %v2418
    %v2429 = vadd.f32 %v2320, %v2418
    %v2430 = vadd.f32 %v2323, %v2418
    %v2431 = vadd.f32 %v2326, %v2418
    %v2432 = vadd.f32 %v2329, %v2418
    %v2433 = vadd.f32 %v2332, %v2418
    %v2434 = vadd.f32 %v2335, %v2418
    %v2435 = vadd.f32 %v2338, %v2418
    %v2436 = vadd.f32 %v2341, %v2418
    %v2437 = vadd.f32 %v2344, %v2418
    %v2438 = vadd.f32 %v2347, %v2418
    %v2439 = vadd.f32 %v2350, %v2418
    %v2440 = vadd.f32 %v2353, %v2418
    %v2441 = vadd.f32 %v2356, %v2418
    %v2442 = vadd.f32 %v2359, %v2418
    %v2443 = vadd.f32 %v2362, %v2418
    %v2444 = vadd.f32 %v2365, %v2418
    %v2445 = vadd.f32 %v2368, %v2418
    %v2446 = vadd.f32 %v2371, %v2418
    %v2447 = vadd.f32 %v2374, %v2418
    %v2448 = vadd.f32 %v2377, %v2418
    %v2449 = vadd.f32 %v2380, %v2418
    %v2450 = vadd.f32 %v2383, %v2418
    %v2451 = vadd.f32 %v2386, %v2418
    %v2452 = vadd.f32 %v2389, %v2418
    %v2453 = vadd.f32 %v2392, %v2418
    %v2454 = vadd.f32 %v2395, %v2418
    %v2455 = vadd.f32 %v2398, %v2418
    %v2456 = vadd.f32 %v2401, %v2418
    %v2457 = vadd.f32 %v2404, %v2418
    %v2458 = vadd.f32 %v2407, %v2418
    %v2499 = vlaneseq
    %v2500 = vand.u32 %v2499, 127
    %v2501 = vlaneseq
    %v2502 = vshrl.u32 %v2501, 7
    %v2503 = vsub.s32 %v2500, %v2502
    %v2504 = vrot.slane %v1692, %v2503
    %v2505 = vadd.s32 %v2500, 4294967288
    %v2506 = vlaneseq
    %v2507 = vshrl.u32 %v2506, 7
    %v2508 = vsub.s32 %v2505, %v2507
    %v2509 = vrot.slane %v1693, %v2508
    %vm2510 = vcmask 130112
    %v2511 = vsel %vm2510, %v2509, %v2504
    %v2512 = vadd.s32 %v2500, 4294967280
    %v2513 = vlaneseq
    %v2514 = vshrl.u32 %v2513, 7
    %v2515 = vsub.s32 %v2512, %v2514
    %v2516 = vrot.slane %v1694, %v2515
    %vm2517 = vcmask 195712
    %v2518 = vsel %vm2517, %v2516, %v2511
    %v2519 = vadd.s32 %v2500, 4294967272
    %v2520 = vlaneseq
    %v2521 = vshrl.u32 %v2520, 7
    %v2522 = vsub.s32 %v2519, %v2521
    %v2523 = vrot.slane %v1695, %v2522
    %vm2524 = vcmask 261312
    %v2525 = vsel %vm2524, %v2523, %v2518
    %v2526 = vadd.s32 %v2500, 4294967264
    %v2527 = vlaneseq
    %v2528 = vshrl.u32 %v2527, 7
    %v2529 = vsub.s32 %v2526, %v2528
    %v2530 = vrot.slane %v1696, %v2529
    %vm2531 = vcmask 326912
    %v2532 = vsel %vm2531, %v2530, %v2525
    %v2533 = vadd.s32 %v2500, 4294967256
    %v2534 = vlaneseq
    %v2535 = vshrl.u32 %v2534, 7
    %v2536 = vsub.s32 %v2533, %v2535
    %v2537 = vrot.slane %v1697, %v2536
    %vm2538 = vcmask 392512
    %v2539 = vsel %vm2538, %v2537, %v2532
    %v2540 = vadd.s32 %v2500, 4294967248
    %v2541 = vlaneseq
    %v2542 = vshrl.u32 %v2541, 7
    %v2543 = vsub.s32 %v2540, %v2542
    %v2544 = vrot.slane %v1698, %v2543
    %vm2545 = vcmask 458112
    %v2546 = vsel %vm2545, %v2544, %v2539
    %v2547 = vadd.s32 %v2500, 4294967240
    %v2548 = vlaneseq
    %v2549 = vshrl.u32 %v2548, 7
    %v2550 = vsub.s32 %v2547, %v2549
    %v2551 = vrot.slane %v1699, %v2550
    %vm2552 = vcmask 523712
    %v2553 = vsel %vm2552, %v2551, %v2546
    %v2554 = vadd.s32 %v2500, 4294967232
    %v2555 = vlaneseq
    %v2556 = vshrl.u32 %v2555, 7
    %v2557 = vsub.s32 %v2554, %v2556
    %v2558 = vrot.slane %v1700, %v2557
    %vm2559 = vcmask 589312
    %v2560 = vsel %vm2559, %v2558, %v2553
    %v2561 = vadd.s32 %v2500, 4294967224
    %v2562 = vlaneseq
    %v2563 = vshrl.u32 %v2562, 7
    %v2564 = vsub.s32 %v2561, %v2563
    %v2565 = vrot.slane %v1701, %v2564
    %vm2566 = vcmask 654912
    %v2567 = vsel %vm2566, %v2565, %v2560
    %v2568 = vadd.s32 %v2500, 4294967216
    %v2569 = vlaneseq
    %v2570 = vshrl.u32 %v2569, 7
    %v2571 = vsub.s32 %v2568, %v2570
    %v2572 = vrot.slane %v1702, %v2571
    %vm2573 = vcmask 720512
    %v2574 = vsel %vm2573, %v2572, %v2567
    %v2575 = vadd.s32 %v2500, 4294967208
    %v2576 = vlaneseq
    %v2577 = vshrl.u32 %v2576, 7
    %v2578 = vsub.s32 %v2575, %v2577
    %v2579 = vrot.slane %v1703, %v2578
    %vm2580 = vcmask 786112
    %v2581 = vsel %vm2580, %v2579, %v2574
    %v2582 = vadd.s32 %v2500, 4294967200
    %v2583 = vlaneseq
    %v2584 = vshrl.u32 %v2583, 7
    %v2585 = vsub.s32 %v2582, %v2584
    %v2586 = vrot.slane %v1704, %v2585
    %vm2587 = vcmask 851712
    %v2588 = vsel %vm2587, %v2586, %v2581
    %v2589 = vadd.s32 %v2500, 4294967192
    %v2590 = vlaneseq
    %v2591 = vshrl.u32 %v2590, 7
    %v2592 = vsub.s32 %v2589, %v2591
    %v2593 = vrot.slane %v1705, %v2592
    %vm2594 = vcmask 917312
    %v2595 = vsel %vm2594, %v2593, %v2588
    %v2596 = vadd.s32 %v2500, 4294967184
    %v2597 = vlaneseq
    %v2598 = vshrl.u32 %v2597, 7
    %v2599 = vsub.s32 %v2596, %v2598
    %v2600 = vrot.slane %v1706, %v2599
    %vm2601 = vcmask 982912
    %v2602 = vsel %vm2601, %v2600, %v2595
    %v2603 = vadd.s32 %v2500, 4294967176
    %v2604 = vlaneseq
    %v2605 = vshrl.u32 %v2604, 7
    %v2606 = vsub.s32 %v2603, %v2605
    %v2607 = vrot.slane %v1707, %v2606
    %vm2608 = vcmask 1048512
    %v2609 = vsel %vm2608, %v2607, %v2602
    %v2610 = vlaneseq
    %v2611 = vshrl.u32 %v2610, 7
    %v2612 = vsub.s32 %v2500, %v2611
    %v2613 = vrot.slane %v1708, %v2612
    %v2614 = vlaneseq
    %v2615 = vshrl.u32 %v2614, 7
    %v2616 = vsub.s32 %v2505, %v2615
    %v2617 = vrot.slane %v1709, %v2616
    %v2618 = vsel %vm2510, %v2617, %v2613
    %v2619 = vlaneseq
    %v2620 = vshrl.u32 %v2619, 7
    %v2621 = vsub.s32 %v2512, %v2620
    %v2622 = vrot.slane %v1710, %v2621
    %v2623 = vsel %vm2517, %v2622, %v2618
    %v2624 = vlaneseq
    %v2625 = vshrl.u32 %v2624, 7
    %v2626 = vsub.s32 %v2519, %v2625
    %v2627 = vrot.slane %v1711, %v2626
    %v2628 = vsel %vm2524, %v2627, %v2623
    %v2629 = vlaneseq
    %v2630 = vshrl.u32 %v2629, 7
    %v2631 = vsub.s32 %v2526, %v2630
    %v2632 = vrot.slane %v1712, %v2631
    %v2633 = vsel %vm2531, %v2632, %v2628
    %v2634 = vlaneseq
    %v2635 = vshrl.u32 %v2634, 7
    %v2636 = vsub.s32 %v2533, %v2635
    %v2637 = vrot.slane %v1713, %v2636
    %v2638 = vsel %vm2538, %v2637, %v2633
    %v2639 = vlaneseq
    %v2640 = vshrl.u32 %v2639, 7
    %v2641 = vsub.s32 %v2540, %v2640
    %v2642 = vrot.slane %v1714, %v2641
    %v2643 = vsel %vm2545, %v2642, %v2638
    %v2644 = vlaneseq
    %v2645 = vshrl.u32 %v2644, 7
    %v2646 = vsub.s32 %v2547, %v2645
    %v2647 = vrot.slane %v1715, %v2646
    %v2648 = vsel %vm2552, %v2647, %v2643
    %v2649 = vlaneseq
    %v2650 = vshrl.u32 %v2649, 7
    %v2651 = vsub.s32 %v2554, %v2650
    %v2652 = vrot.slane %v1716, %v2651
    %v2653 = vsel %vm2559, %v2652, %v2648
    %v2654 = vlaneseq
    %v2655 = vshrl.u32 %v2654, 7
    %v2656 = vsub.s32 %v2561, %v2655
    %v2657 = vrot.slane %v1717, %v2656
    %v2658 = vsel %vm2566, %v2657, %v2653
    %v2659 = vlaneseq
    %v2660 = vshrl.u32 %v2659, 7
    %v2661 = vsub.s32 %v2568, %v2660
    %v2662 = vrot.slane %v1718, %v2661
    %v2663 = vsel %vm2573, %v2662, %v2658
    %v2664 = vlaneseq
    %v2665 = vshrl.u32 %v2664, 7
    %v2666 = vsub.s32 %v2575, %v2665
    %v2667 = vrot.slane %v1719, %v2666
    %v2668 = vsel %vm2580, %v2667, %v2663
    %v2669 = vlaneseq
    %v2670 = vshrl.u32 %v2669, 7
    %v2671 = vsub.s32 %v2582, %v2670
    %v2672 = vrot.slane %v1720, %v2671
    %v2673 = vsel %vm2587, %v2672, %v2668
    %v2674 = vlaneseq
    %v2675 = vshrl.u32 %v2674, 7
    %v2676 = vsub.s32 %v2589, %v2675
    %v2677 = vrot.slane %v1721, %v2676
    %v2678 = vsel %vm2594, %v2677, %v2673
    %v2679 = vlaneseq
    %v2680 = vshrl.u32 %v2679, 7
    %v2681 = vsub.s32 %v2596, %v2680
    %v2682 = vrot.slane %v1722, %v2681
    %v2683 = vsel %vm2601, %v2682, %v2678
    %v2684 = vlaneseq
    %v2685 = vshrl.u32 %v2684, 7
    %v2686 = vsub.s32 %v2603, %v2685
    %v2687 = vrot.slane %v1723, %v2686
    %v2688 = vsel %vm2608, %v2687, %v2683
    %v2689 = vlaneseq
    %v2690 = vshrl.u32 %v2689, 7
    %v2691 = vsub.s32 %v2500, %v2690
    %v2692 = vrot.slane %v1724, %v2691
    %v2693 = vlaneseq
    %v2694 = vshrl.u32 %v2693, 7
    %v2695 = vsub.s32 %v2505, %v2694
    %v2696 = vrot.slane %v1725, %v2695
    %v2697 = vsel %vm2510, %v2696, %v2692
    %v2698 = vlaneseq
    %v2699 = vshrl.u32 %v2698, 7
    %v2700 = vsub.s32 %v2512, %v2699
    %v2701 = vrot.slane %v1726, %v2700
    %v2702 = vsel %vm2517, %v2701, %v2697
    %v2703 = vlaneseq
    %v2704 = vshrl.u32 %v2703, 7
    %v2705 = vsub.s32 %v2519, %v2704
    %v2706 = vrot.slane %v1727, %v2705
    %v2707 = vsel %vm2524, %v2706, %v2702
    %v2708 = vlaneseq
    %v2709 = vshrl.u32 %v2708, 7
    %v2710 = vsub.s32 %v2526, %v2709
    %v2711 = vrot.slane %v1728, %v2710
    %v2712 = vsel %vm2531, %v2711, %v2707
    %v2713 = vlaneseq
    %v2714 = vshrl.u32 %v2713, 7
    %v2715 = vsub.s32 %v2533, %v2714
    %v2716 = vrot.slane %v1729, %v2715
    %v2717 = vsel %vm2538, %v2716, %v2712
    %v2718 = vlaneseq
    %v2719 = vshrl.u32 %v2718, 7
    %v2720 = vsub.s32 %v2540, %v2719
    %v2721 = vrot.slane %v1730, %v2720
    %v2722 = vsel %vm2545, %v2721, %v2717
    %v2723 = vlaneseq
    %v2724 = vshrl.u32 %v2723, 7
    %v2725 = vsub.s32 %v2547, %v2724
    %v2726 = vrot.slane %v1731, %v2725
    %v2727 = vsel %vm2552, %v2726, %v2722
    %v2771 = vlaneseq
    %v2772 = vshrl.u32 %v2771, 7
    %v2773 = vsub.s32 %v2500, %v2772
    %v2774 = vrot.slane %v2419, %v2773
    %v2775 = vlaneseq
    %v2776 = vshrl.u32 %v2775, 7
    %v2777 = vsub.s32 %v2505, %v2776
    %v2778 = vrot.slane %v2420, %v2777
    %v2779 = vsel %vm2510, %v2778, %v2774
    %v2780 = vlaneseq
    %v2781 = vshrl.u32 %v2780, 7
    %v2782 = vsub.s32 %v2512, %v2781
    %v2783 = vrot.slane %v2421, %v2782
    %v2784 = vsel %vm2517, %v2783, %v2779
    %v2785 = vlaneseq
    %v2786 = vshrl.u32 %v2785, 7
    %v2787 = vsub.s32 %v2519, %v2786
    %v2788 = vrot.slane %v2422, %v2787
    %v2789 = vsel %vm2524, %v2788, %v2784
    %v2790 = vlaneseq
    %v2791 = vshrl.u32 %v2790, 7
    %v2792 = vsub.s32 %v2526, %v2791
    %v2793 = vrot.slane %v2423, %v2792
    %v2794 = vsel %vm2531, %v2793, %v2789
    %v2795 = vlaneseq
    %v2796 = vshrl.u32 %v2795, 7
    %v2797 = vsub.s32 %v2533, %v2796
    %v2798 = vrot.slane %v2424, %v2797
    %v2799 = vsel %vm2538, %v2798, %v2794
    %v2800 = vlaneseq
    %v2801 = vshrl.u32 %v2800, 7
    %v2802 = vsub.s32 %v2540, %v2801
    %v2803 = vrot.slane %v2425, %v2802
    %v2804 = vsel %vm2545, %v2803, %v2799
    %v2805 = vlaneseq
    %v2806 = vshrl.u32 %v2805, 7
    %v2807 = vsub.s32 %v2547, %v2806
    %v2808 = vrot.slane %v2426, %v2807
    %v2809 = vsel %vm2552, %v2808, %v2804
    %v2810 = vlaneseq
    %v2811 = vshrl.u32 %v2810, 7
    %v2812 = vsub.s32 %v2554, %v2811
    %v2813 = vrot.slane %v2427, %v2812
    %v2814 = vsel %vm2559, %v2813, %v2809
    %v2815 = vlaneseq
    %v2816 = vshrl.u32 %v2815, 7
    %v2817 = vsub.s32 %v2561, %v2816
    %v2818 = vrot.slane %v2428, %v2817
    %v2819 = vsel %vm2566, %v2818, %v2814
    %v2820 = vlaneseq
    %v2821 = vshrl.u32 %v2820, 7
    %v2822 = vsub.s32 %v2568, %v2821
    %v2823 = vrot.slane %v2429, %v2822
    %v2824 = vsel %vm2573, %v2823, %v2819
    %v2825 = vlaneseq
    %v2826 = vshrl.u32 %v2825, 7
    %v2827 = vsub.s32 %v2575, %v2826
    %v2828 = vrot.slane %v2430, %v2827
    %v2829 = vsel %vm2580, %v2828, %v2824
    %v2830 = vlaneseq
    %v2831 = vshrl.u32 %v2830, 7
    %v2832 = vsub.s32 %v2582, %v2831
    %v2833 = vrot.slane %v2431, %v2832
    %v2834 = vsel %vm2587, %v2833, %v2829
    %v2835 = vlaneseq
    %v2836 = vshrl.u32 %v2835, 7
    %v2837 = vsub.s32 %v2589, %v2836
    %v2838 = vrot.slane %v2432, %v2837
    %v2839 = vsel %vm2594, %v2838, %v2834
    %v2840 = vlaneseq
    %v2841 = vshrl.u32 %v2840, 7
    %v2842 = vsub.s32 %v2596, %v2841
    %v2843 = vrot.slane %v2433, %v2842
    %v2844 = vsel %vm2601, %v2843, %v2839
    %v2845 = vlaneseq
    %v2846 = vshrl.u32 %v2845, 7
    %v2847 = vsub.s32 %v2603, %v2846
    %v2848 = vrot.slane %v2434, %v2847
    %v2849 = vsel %vm2608, %v2848, %v2844
    %v2850 = vlaneseq
    %v2851 = vshrl.u32 %v2850, 7
    %v2852 = vsub.s32 %v2500, %v2851
    %v2853 = vrot.slane %v2435, %v2852
    %v2854 = vlaneseq
    %v2855 = vshrl.u32 %v2854, 7
    %v2856 = vsub.s32 %v2505, %v2855
    %v2857 = vrot.slane %v2436, %v2856
    %v2858 = vsel %vm2510, %v2857, %v2853
    %v2859 = vlaneseq
    %v2860 = vshrl.u32 %v2859, 7
    %v2861 = vsub.s32 %v2512, %v2860
    %v2862 = vrot.slane %v2437, %v2861
    %v2863 = vsel %vm2517, %v2862, %v2858
    %v2864 = vlaneseq
    %v2865 = vshrl.u32 %v2864, 7
    %v2866 = vsub.s32 %v2519, %v2865
    %v2867 = vrot.slane %v2438, %v2866
    %v2868 = vsel %vm2524, %v2867, %v2863
    %v2869 = vlaneseq
    %v2870 = vshrl.u32 %v2869, 7
    %v2871 = vsub.s32 %v2526, %v2870
    %v2872 = vrot.slane %v2439, %v2871
    %v2873 = vsel %vm2531, %v2872, %v2868
    %v2874 = vlaneseq
    %v2875 = vshrl.u32 %v2874, 7
    %v2876 = vsub.s32 %v2533, %v2875
    %v2877 = vrot.slane %v2440, %v2876
    %v2878 = vsel %vm2538, %v2877, %v2873
    %v2879 = vlaneseq
    %v2880 = vshrl.u32 %v2879, 7
    %v2881 = vsub.s32 %v2540, %v2880
    %v2882 = vrot.slane %v2441, %v2881
    %v2883 = vsel %vm2545, %v2882, %v2878
    %v2884 = vlaneseq
    %v2885 = vshrl.u32 %v2884, 7
    %v2886 = vsub.s32 %v2547, %v2885
    %v2887 = vrot.slane %v2442, %v2886
    %v2888 = vsel %vm2552, %v2887, %v2883
    %v2889 = vlaneseq
    %v2890 = vshrl.u32 %v2889, 7
    %v2891 = vsub.s32 %v2554, %v2890
    %v2892 = vrot.slane %v2443, %v2891
    %v2893 = vsel %vm2559, %v2892, %v2888
    %v2894 = vlaneseq
    %v2895 = vshrl.u32 %v2894, 7
    %v2896 = vsub.s32 %v2561, %v2895
    %v2897 = vrot.slane %v2444, %v2896
    %v2898 = vsel %vm2566, %v2897, %v2893
    %v2899 = vlaneseq
    %v2900 = vshrl.u32 %v2899, 7
    %v2901 = vsub.s32 %v2568, %v2900
    %v2902 = vrot.slane %v2445, %v2901
    %v2903 = vsel %vm2573, %v2902, %v2898
    %v2904 = vlaneseq
    %v2905 = vshrl.u32 %v2904, 7
    %v2906 = vsub.s32 %v2575, %v2905
    %v2907 = vrot.slane %v2446, %v2906
    %v2908 = vsel %vm2580, %v2907, %v2903
    %v2909 = vlaneseq
    %v2910 = vshrl.u32 %v2909, 7
    %v2911 = vsub.s32 %v2582, %v2910
    %v2912 = vrot.slane %v2447, %v2911
    %v2913 = vsel %vm2587, %v2912, %v2908
    %v2914 = vlaneseq
    %v2915 = vshrl.u32 %v2914, 7
    %v2916 = vsub.s32 %v2589, %v2915
    %v2917 = vrot.slane %v2448, %v2916
    %v2918 = vsel %vm2594, %v2917, %v2913
    %v2919 = vlaneseq
    %v2920 = vshrl.u32 %v2919, 7
    %v2921 = vsub.s32 %v2596, %v2920
    %v2922 = vrot.slane %v2449, %v2921
    %v2923 = vsel %vm2601, %v2922, %v2918
    %v2924 = vlaneseq
    %v2925 = vshrl.u32 %v2924, 7
    %v2926 = vsub.s32 %v2603, %v2925
    %v2927 = vrot.slane %v2450, %v2926
    %v2928 = vsel %vm2608, %v2927, %v2923
    %v2929 = vlaneseq
    %v2930 = vshrl.u32 %v2929, 7
    %v2931 = vsub.s32 %v2500, %v2930
    %v2932 = vrot.slane %v2451, %v2931
    %v2933 = vlaneseq
    %v2934 = vshrl.u32 %v2933, 7
    %v2935 = vsub.s32 %v2505, %v2934
    %v2936 = vrot.slane %v2452, %v2935
    %v2937 = vsel %vm2510, %v2936, %v2932
    %v2938 = vlaneseq
    %v2939 = vshrl.u32 %v2938, 7
    %v2940 = vsub.s32 %v2512, %v2939
    %v2941 = vrot.slane %v2453, %v2940
    %v2942 = vsel %vm2517, %v2941, %v2937
    %v2943 = vlaneseq
    %v2944 = vshrl.u32 %v2943, 7
    %v2945 = vsub.s32 %v2519, %v2944
    %v2946 = vrot.slane %v2454, %v2945
    %v2947 = vsel %vm2524, %v2946, %v2942
    %v2948 = vlaneseq
    %v2949 = vshrl.u32 %v2948, 7
    %v2950 = vsub.s32 %v2526, %v2949
    %v2951 = vrot.slane %v2455, %v2950
    %v2952 = vsel %vm2531, %v2951, %v2947
    %v2953 = vlaneseq
    %v2954 = vshrl.u32 %v2953, 7
    %v2955 = vsub.s32 %v2533, %v2954
    %v2956 = vrot.slane %v2456, %v2955
    %v2957 = vsel %vm2538, %v2956, %v2952
    %v2958 = vlaneseq
    %v2959 = vshrl.u32 %v2958, 7
    %v2960 = vsub.s32 %v2540, %v2959
    %v2961 = vrot.slane %v2457, %v2960
    %v2962 = vsel %vm2545, %v2961, %v2957
    %v2963 = vlaneseq
    %v2964 = vshrl.u32 %v2963, 7
    %v2965 = vsub.s32 %v2547, %v2964
    %v2966 = vrot.slane %v2458, %v2965
    %v2967 = vsel %vm2552, %v2966, %v2962
    %vm2971 = vcmask 1040384
    %v2972 = vsel %vm2971, %v2609, %v2849
    %v2973 = vsel %vm2971, %v2688, %v2928
    %v2974 = vsel %vm2971, %v2727, %v2967
    %v2978 = vcombine.low %v2972, %v2973
    %v2980 = vunpack.c.l.s4 1983009808
    %v2981 = vunpack.c.0.s8 %v2980
    %v2982 = vlaneseq
    %v2983 = vshrl.u32 %v2982, 7
    %v2984 = vsub.s32 %v2981, %v2983
    %v2985 = vrot.slane %v2978, %v2984
    %v2987 = vunpack.c.l.s4 1983009808
    %v2988 = vunpack.c.0.s8 %v2987
    %v2989 = vlaneseq
    %v2990 = vshrl.u32 %v2989, 7
    %v2991 = vsub.s32 %v2988, %v2990
    %v2992 = vrot.slane %v2974, %v2991
    %v2993 = vcombine.low %v2985, %v2992
    %vm2995 = vcmask 1041408
    %vm2996 = vcmask 1043458
    %vm2997 = vmor %vm2996, %vm2995
    %vm2998 = vcmask 521220
    %vm2999 = vmor %vm2998, %vm2997
    %3000 = vst.msk [vmem:[%s7] sm:$0x3f] %vm2999, %v2993
    // Predicated region
    $region34: #{double_critic_forward.1} parent=1 // pred_check
      _
    $region35: #{double_critic_forward.1} parent=1 // pred_check_branch
      %3002 = sbr.rel (0) target = $region37
    $region36: #{double_critic_forward.1} parent=1 // pred_region
      _
    $region37: #{double_critic_forward.1} parent=1 // pred_fallthru
      _
    // Predicated region
    $region38: #{double_critic_forward.1} parent=1 // pred_check
      _
    $region39: #{double_critic_forward.1} parent=1 // pred_check_branch
      %3004 = sbr.rel (0) target = $region41
    $region40: #{double_critic_forward.1} parent=1 // pred_region
      _
    $region41: #{double_critic_forward.1} parent=1 // pred_fallthru
      _
    %3005 = vsyncpa [#allocation3], 1

</llo_original>
